<compile_context>
chip_gen: v7x
topology: tpu7x:2x2x1
jax: 0.10.0
libtpu: 0.0.40
codegen_flags: <defaults>
</compile_context>

<pallas_src>
import jax
import jax.numpy as jnp
from jax.experimental import pallas as pl
from jax.experimental.pallas import tpu as pltpu


def _kga_kernel(x_q_ref, otsu_q_ref, x_k_ref, otsu_k_ref,
                mT_ref, vb_ref, wvT_ref, gbv_ref,
                out_ref,
                mq_s, m_s, l_s, acc_s):
    """One (batch, q-tile, kv-tile) grid step of flash-style key-region attention.

    In-kernel shapes (channel-first, spatial positions on the lane axis):
      x_q_ref    (1, C, TQ)  query-side block of x (resident across KV axis)
      otsu_q_ref (1, 1, TQ)
      x_k_ref    (1, C, TK)  kv-side block of x
      otsu_k_ref (1, 1, TK)
      mT_ref     (C, C) bf16 = Wk @ Wq^T
      vb_ref     (C, 1) bf16 = Wk @ bq^T          (query-bias fold)
      wvT_ref    (C, C) bf16 = gamma * Wv^T       (gamma folded)
      gbv_ref    (C, 1) f32  = gamma * bv         (added once at finalize)
      out_ref    (1, C, TQ)
    Scratch (persists across the KV axis):
      mq_s  (TQ, C) bf16 : [(Wk Wq^T) kr_q + Wk bq^T]^T, cached per query tile
      m_s   (TQ, 1) f32  : running row max
      l_s   (TQ, 1) f32  : running row sum
      acc_s (TQ, C) f32  : running unnormalized attention output
    """
    ki = pl.program_id(2)

    @pl.when(ki == 0)
    def _init():
        kr_q = (x_q_ref[0] * otsu_q_ref[0]).astype(jnp.bfloat16)             # (C, TQ)
        mq = jnp.dot(mT_ref[...], kr_q, preferred_element_type=jnp.float32)  # (C, TQ)
        mq = mq + vb_ref[...].astype(jnp.float32)
        mq_s[...] = jnp.transpose(mq).astype(jnp.bfloat16)                   # (TQ, C)
        m_s[...] = jnp.full(m_s.shape, -jnp.inf, dtype=m_s.dtype)
        l_s[...] = jnp.zeros(l_s.shape, dtype=l_s.dtype)
        acc_s[...] = jnp.zeros(acc_s.shape, dtype=acc_s.dtype)

    kr_k = (x_k_ref[0] * otsu_k_ref[0]).astype(jnp.bfloat16)                 # (C, TK)

    # energy_eff[i, j] = kr_q[:,i]^T (Wq Wk^T) kr_k[:,j] + bq . (Wk^T kr_k[:,j])
    # (terms constant along the softmax axis were dropped; see wrapper)
    e = jnp.dot(mq_s[...], kr_k, preferred_element_type=jnp.float32)         # (TQ, TK)

    m_prev = m_s[...]                                                        # (TQ, 1)
    m_new = jnp.maximum(m_prev, jnp.max(e, axis=-1, keepdims=True))          # (TQ, 1)
    alpha = jnp.exp(m_prev - m_new)                                          # (TQ, 1)
    p = jnp.exp(e - m_new)                                                   # (TQ, TK)

    m_s[...] = m_new
    l_s[...] = alpha * l_s[...] + jnp.sum(p, axis=-1, keepdims=True)

    # Value projection; gamma is pre-folded into wvT, bias handled at finalize.
    v = jnp.dot(wvT_ref[...], kr_k,
                preferred_element_type=jnp.float32).astype(jnp.bfloat16)     # (C, TK)

    # acc[i, c] += sum_j p[i, j] * v[c, j]   (contract the TK axis of both)
    acc_s[...] = acc_s[...] * alpha + jax.lax.dot_general(
        p.astype(jnp.bfloat16), v,
        dimension_numbers=(((1,), (1,)), ((), ())),
        preferred_element_type=jnp.float32)                                  # (TQ, C)

    @pl.when(ki == pl.num_programs(2) - 1)
    def _finalize():
        inv_l = pl.reciprocal(l_s[...], approx=True)                         # (TQ, 1)
        o = acc_s[...] * inv_l                                               # (TQ, C); gamma already applied
        out_ref[0] = (jnp.transpose(o) + gbv_ref[...] + x_q_ref[0]).astype(out_ref.dtype)


def _pick_tile(n, candidates=(512, 256, 128)):
    for t in candidates:
        if n % t == 0:
            return t
    return n  # fall back to a single (untiled) block along that axis


def key_region_guided_attention(x, otsu, params, *, tq=None, tk=None):
    """x: (B, C, H, W) float32 NCHW, otsu: (B, 1, H, W).  Returns (B, C, H, W).

    params = (wq, bq, wk, bk, wv, bv, gamma): 1x1-conv weights stored as
    (C_in, C_out) matrices, biases as (1, C_out), gamma shaped like the
    PyTorch nn.Parameter(torch.zeros(1)) (any scalar-reshapeable array).
    """
    b, c, h, w = x.shape
    n = h * w
    wq, bq, wk, bk, wv, bv, gamma = params
    del bk  # key bias shifts every logit of a softmax row equally -> no effect

    if tq is None:
        tq = _pick_tile(n)
    if tk is None:
        tk = _pick_tile(n)
    assert n % tq == 0 and n % tk == 0, (n, tq, tk)

    # Channel-first, spatially flattened views: no HBM transpose passes.
    x_cn = x.reshape(b, c, n)
    otsu_cn = otsu.reshape(b, 1, n)

    # Fold the Q/K projections.  With q_i = Wq^T kr_q[:,i] + bq^T and
    # k_j = Wk^T kr_k[:,j] + bk^T, the softmax-relevant part of q_i . k_j is
    #   kr_q[:,i]^T (Wq Wk^T) kr_k[:,j] + bq . (Wk^T kr_k[:,j])
    # which equals kr_k^T @ [ (Wk Wq^T) kr_q + Wk bq^T ], so a single C-wide
    # projection per query tile feeds the energy matmul.
    g = jnp.asarray(gamma, jnp.float32).reshape(())
    mT = jnp.dot(wk, wq.T).astype(jnp.bfloat16)                  # (C, C) = (Wq Wk^T)^T
    vb = jnp.dot(wk, bq.reshape(-1, 1)).astype(jnp.bfloat16)     # (C, 1)
    wvT_g = (g * wv.T).astype(jnp.bfloat16)                      # (C, C), gamma folded
    gbv = (g * bv.reshape(-1, 1)).astype(jnp.float32)            # (C, 1), softmax rows sum to 1

    grid = (b, n // tq, n // tk)

    out_cn = pl.pallas_call(
        _kga_kernel,
        out_shape=jax.ShapeDtypeStruct((b, c, n), x.dtype),
        grid=grid,
        in_specs=[
            pl.BlockSpec((1, c, tq), lambda bi, qi, ki: (bi, 0, qi)),   # x  (q side)
            pl.BlockSpec((1, 1, tq), lambda bi, qi, ki: (bi, 0, qi)),   # otsu (q side)
            pl.BlockSpec((1, c, tk), lambda bi, qi, ki: (bi, 0, ki)),   # x  (kv side)
            pl.BlockSpec((1, 1, tk), lambda bi, qi, ki: (bi, 0, ki)),   # otsu (kv side)
            pl.BlockSpec((c, c), lambda bi, qi, ki: (0, 0)),            # Wk Wq^T
            pl.BlockSpec((c, 1), lambda bi, qi, ki: (0, 0)),            # Wk bq^T
            pl.BlockSpec((c, c), lambda bi, qi, ki: (0, 0)),            # gamma * Wv^T
            pl.BlockSpec((c, 1), lambda bi, qi, ki: (0, 0)),            # gamma * bv
        ],
        out_specs=pl.BlockSpec((1, c, tq), lambda bi, qi, ki: (bi, 0, qi)),
        scratch_shapes=[
            pltpu.VMEM((tq, c), jnp.bfloat16),   # cached query-side projection
            pltpu.VMEM((tq, 1), jnp.float32),    # running max
            pltpu.VMEM((tq, 1), jnp.float32),    # running sum
            pltpu.VMEM((tq, c), jnp.float32),    # accumulator
        ],
        compiler_params=pltpu.CompilerParams(
            dimension_semantics=("parallel", "parallel", "arbitrary"),
            vmem_limit_bytes=32 * 1024 * 1024,
        ),
    )(x_cn, otsu_cn, x_cn, otsu_cn, mT, vb, wvT_g, gbv)

    return out_cn.reshape(b, c, h, w)


def reference(x, otsu, params):
    """Pure-JAX f32 reference mirroring the PyTorch forward exactly."""
    wq, bq, wk, bk, wv, bv, gamma = params
    b, c, h, w = x.shape
    n = h * w
    kr = x * otsu                                                   # (B, C, H, W)
    kr_f = kr.reshape(b, c, n)                                      # (B, C, N)
    q = jnp.einsum('bcn,cd->bdn', kr_f, wq) + bq.reshape(1, -1, 1)  # (B, C8, N)
    k = jnp.einsum('bcn,cd->bdn', kr_f, wk) + bk.reshape(1, -1, 1)
    v = jnp.einsum('bcn,cd->bdn', kr_f, wv) + bv.reshape(1, -1, 1)  # (B, C, N)
    energy = jnp.einsum('bdi,bdj->bij', q, k)                       # (B, N, N)
    attn = jax.nn.softmax(energy, axis=-1)
    out = jnp.einsum('bci,bji->bcj', v, attn)                       # (B, C, N)
    out = out.reshape(b, c, h, w)
    g = jnp.asarray(gamma, jnp.float32).reshape(())
    return g * out + x


if __name__ == "__main__":
    B, C, H, W = 2, 32, 16, 16
    C8 = C // 8

    key = jax.random.PRNGKey(0)
    ks = jax.random.split(key, 8)

    x = jax.random.normal(ks[0], (B, C, H, W), dtype=jnp.float32)
    otsu = (jax.random.uniform(ks[1], (B, 1, H, W)) > 0.5).astype(jnp.float32)

    # Parameters (1x1-conv weights stored as (C_in, C_out) matrices).
    wq = jax.random.normal(ks[2], (C, C8), dtype=jnp.float32) * 0.1
    bq = jax.random.normal(ks[3], (1, C8), dtype=jnp.float32) * 0.1
    wk = jax.random.normal(ks[4], (C, C8), dtype=jnp.float32) * 0.1
    bk = jax.random.normal(ks[5], (1, C8), dtype=jnp.float32) * 0.1
    wv = jax.random.normal(ks[6], (C, C), dtype=jnp.float32) * 0.1
    bv = jax.random.normal(ks[7], (1, C), dtype=jnp.float32) * 0.1
    # nn.Parameter(torch.zeros(1)) -> shape (1,); nonzero to exercise the path.
    gamma = jnp.full((1,), 0.5, dtype=jnp.float32)

    params = (wq, bq, wk, bk, wv, bv, gamma)

    # N = 256; force tq = tk = 128 so the grid is (B, 2, 2) and the online
    # softmax runs across multiple KV tiles.
    out = jax.block_until_ready(
        key_region_guided_attention(x, otsu, params, tq=128, tk=128))
    ref = jax.block_until_ready(reference(x, otsu, params))

    assert out.shape == (B, C, H, W)
    # bf16 MXU inputs (f32 accumulation) -> relaxed tolerance; the residual
    # x path is exact f32.
    err = jnp.max(jnp.abs(out - ref))
    assert jnp.allclose(out, ref, atol=2e-2, rtol=2e-2), f"max abs err = {err}"
    print("KERNEL_OK")
</pallas_src>

<mosaic_0001>
module attributes {stable_mosaic.version = 11 : i64} {
  func.func @_kga_kernel(%arg0: i32, %arg1: i32, %arg2: i32, %arg3: memref<1x32x128xf32, #tpu.memory_space<vmem>>, %arg4: memref<1x1x128xf32, #tpu.memory_space<vmem>>, %arg5: memref<1x32x128xf32, #tpu.memory_space<vmem>>, %arg6: memref<1x1x128xf32, #tpu.memory_space<vmem>>, %arg7: memref<32x32xbf16, #tpu.memory_space<vmem>>, %arg8: memref<32x1xbf16, #tpu.memory_space<vmem>>, %arg9: memref<32x32xbf16, #tpu.memory_space<vmem>>, %arg10: memref<32x1xf32, #tpu.memory_space<vmem>>, %arg11: memref<1x32x128xf32, #tpu.memory_space<vmem>>, %arg12: memref<128x32xbf16, #tpu.memory_space<vmem>>, %arg13: memref<128x1xf32, #tpu.memory_space<vmem>>, %arg14: memref<128x1xf32, #tpu.memory_space<vmem>>, %arg15: memref<128x32xf32, #tpu.memory_space<vmem>>) attributes {dimension_semantics = [#tpu.dimension_semantics<parallel>, #tpu.dimension_semantics<parallel>, #tpu.dimension_semantics<arbitrary>], iteration_bounds = array<i64: 2, 2, 2>, scalar_prefetch = 0 : i64, scratch_operands = 4 : i64, tpu.core_type = #tpu.core_type<tc>, window_params = [{transform_indices = @transform_0, window_bounds = array<i64: 1, 32, 128>}, {transform_indices = @transform_1, window_bounds = array<i64: 1, 1, 128>}, {transform_indices = @transform_2, window_bounds = array<i64: 1, 32, 128>}, {transform_indices = @transform_3, window_bounds = array<i64: 1, 1, 128>}, {pipeline_mode = #tpu.pipeline_mode<synchronous>, transform_indices = @transform_4, window_bounds = array<i64: 32, 32>}, {pipeline_mode = #tpu.pipeline_mode<synchronous>, transform_indices = @transform_5, window_bounds = array<i64: 32, 1>}, {pipeline_mode = #tpu.pipeline_mode<synchronous>, transform_indices = @transform_6, window_bounds = array<i64: 32, 32>}, {pipeline_mode = #tpu.pipeline_mode<synchronous>, transform_indices = @transform_7, window_bounds = array<i64: 32, 1>}, {transform_indices = @transform_8, window_bounds = array<i64: 1, 32, 128>}]} {
    %c0_i32 = arith.constant 0 : i32
    %0 = arith.cmpi eq, %arg2, %c0_i32 : i32
    %1 = arith.extui %0 : i1 to i32
    %c0_i32_0 = arith.constant 0 : i32
    %2 = arith.cmpi ne, %1, %c0_i32_0 : i32
    scf.if %2 {
      %c0_27 = arith.constant 0 : index
      %c0_28 = arith.constant 0 : index
      %c0_29 = arith.constant 0 : index
      %41 = vector.load %arg3[%c0_27, %c0_28, %c0_29] : memref<1x32x128xf32, #tpu.memory_space<vmem>>, vector<1x32x128xf32>
      %42 = vector.shape_cast %41 : vector<1x32x128xf32> to vector<32x128xf32>
      %c0_30 = arith.constant 0 : index
      %c0_31 = arith.constant 0 : index
      %c0_32 = arith.constant 0 : index
      %43 = vector.load %arg4[%c0_30, %c0_31, %c0_32] : memref<1x1x128xf32, #tpu.memory_space<vmem>>, vector<1x1x128xf32>
      %44 = vector.shape_cast %43 : vector<1x1x128xf32> to vector<1x128xf32>
      %45 = vector.broadcast %44 : vector<1x128xf32> to vector<32x128xf32>
      %46 = arith.mulf %42, %45 : vector<32x128xf32>
      %47 = arith.truncf %46 : vector<32x128xf32> to vector<32x128xbf16>
      %c0_33 = arith.constant 0 : index
      %c0_34 = arith.constant 0 : index
      %48 = vector.load %arg7[%c0_33, %c0_34] : memref<32x32xbf16, #tpu.memory_space<vmem>>, vector<32x32xbf16>
      %cst_35 = arith.constant dense<0.000000e+00> : vector<32x128xf32>
      %49 = tpu.matmul %48, %47, %cst_35 {dimension_numbers = #tpu.dot_dimension_numbers<[1], [0], [0], [1], [0, 0, 1, 1], [], []>} : vector<32x32xbf16>, vector<32x128xbf16>, vector<32x128xf32> -> vector<32x128xf32>
      %c0_36 = arith.constant 0 : index
      %c0_37 = arith.constant 0 : index
      %50 = vector.load %arg8[%c0_36, %c0_37] : memref<32x1xbf16, #tpu.memory_space<vmem>>, vector<32x1xbf16>
      %51 = arith.extf %50 : vector<32x1xbf16> to vector<32x1xf32>
      %52 = vector.broadcast %51 : vector<32x1xf32> to vector<32x128xf32>
      %53 = arith.addf %49, %52 : vector<32x128xf32>
      %54 = tpu.transpose %53, [1, 0] : vector<32x128xf32> -> vector<128x32xf32>
      %55 = arith.truncf %54 : vector<128x32xf32> to vector<128x32xbf16>
      %c0_38 = arith.constant 0 : index
      %c0_39 = arith.constant 0 : index
      %56 = vector.load %arg12[%c0_38, %c0_39] : memref<128x32xbf16, #tpu.memory_space<vmem>>, vector<128x32xbf16>
      tpu.vector_store %arg12[%c0_38, %c0_39], %55 {strides = array<i32>} : memref<128x32xbf16, #tpu.memory_space<vmem>>, vector<128x32xbf16>,
      %cst_40 = arith.constant 0xFF800000 : f32
      %57 = vector.broadcast %cst_40 : f32 to vector<128x1xf32>
      %c0_41 = arith.constant 0 : index
      %c0_42 = arith.constant 0 : index
      %58 = vector.load %arg13[%c0_41, %c0_42] : memref<128x1xf32, #tpu.memory_space<vmem>>, vector<128x1xf32>
      tpu.vector_store %arg13[%c0_41, %c0_42], %57 {strides = array<i32>} : memref<128x1xf32, #tpu.memory_space<vmem>>, vector<128x1xf32>,
      %cst_43 = arith.constant 0.000000e+00 : f32
      %59 = vector.broadcast %cst_43 : f32 to vector<128x1xf32>
      %c0_44 = arith.constant 0 : index
      %c0_45 = arith.constant 0 : index
      %60 = vector.load %arg14[%c0_44, %c0_45] : memref<128x1xf32, #tpu.memory_space<vmem>>, vector<128x1xf32>
      tpu.vector_store %arg14[%c0_44, %c0_45], %59 {strides = array<i32>} : memref<128x1xf32, #tpu.memory_space<vmem>>, vector<128x1xf32>,
      %cst_46 = arith.constant 0.000000e+00 : f32
      %61 = vector.broadcast %cst_46 : f32 to vector<128x32xf32>
      %c0_47 = arith.constant 0 : index
      %c0_48 = arith.constant 0 : index
      %62 = vector.load %arg15[%c0_47, %c0_48] : memref<128x32xf32, #tpu.memory_space<vmem>>, vector<128x32xf32>
      tpu.vector_store %arg15[%c0_47, %c0_48], %61 {strides = array<i32>} : memref<128x32xf32, #tpu.memory_space<vmem>>, vector<128x32xf32>,
    } else {
    }
    %c0 = arith.constant 0 : index
    %c0_1 = arith.constant 0 : index
    %c0_2 = arith.constant 0 : index
    %3 = vector.load %arg5[%c0, %c0_1, %c0_2] : memref<1x32x128xf32, #tpu.memory_space<vmem>>, vector<1x32x128xf32>
    %4 = vector.shape_cast %3 : vector<1x32x128xf32> to vector<32x128xf32>
    %c0_3 = arith.constant 0 : index
    %c0_4 = arith.constant 0 : index
    %c0_5 = arith.constant 0 : index
    %5 = vector.load %arg6[%c0_3, %c0_4, %c0_5] : memref<1x1x128xf32, #tpu.memory_space<vmem>>, vector<1x1x128xf32>
    %6 = vector.shape_cast %5 : vector<1x1x128xf32> to vector<1x128xf32>
    %7 = vector.broadcast %6 : vector<1x128xf32> to vector<32x128xf32>
    %8 = arith.mulf %4, %7 : vector<32x128xf32>
    %9 = arith.truncf %8 : vector<32x128xf32> to vector<32x128xbf16>
    %c0_6 = arith.constant 0 : index
    %c0_7 = arith.constant 0 : index
    %10 = vector.load %arg12[%c0_6, %c0_7] : memref<128x32xbf16, #tpu.memory_space<vmem>>, vector<128x32xbf16>
    %cst = arith.constant dense<0.000000e+00> : vector<128x128xf32>
    %11 = tpu.matmul %10, %9, %cst {dimension_numbers = #tpu.dot_dimension_numbers<[1], [0], [0], [1], [0, 0, 1, 1], [], []>} : vector<128x32xbf16>, vector<32x128xbf16>, vector<128x128xf32> -> vector<128x128xf32>
    %c0_8 = arith.constant 0 : index
    %c0_9 = arith.constant 0 : index
    %12 = vector.load %arg13[%c0_8, %c0_9] : memref<128x1xf32, #tpu.memory_space<vmem>>, vector<128x1xf32>
    %cst_10 = arith.constant dense<0xFF800000> : vector<128xf32>
    %13 = vector.multi_reduction <maximumf>, %11, %cst_10 [1] : vector<128x128xf32> to vector<128xf32>
    %14 = vector.shape_cast %13 : vector<128xf32> to vector<128x1xf32>
    %15 = arith.maximumf %12, %14 : vector<128x1xf32>
    %16 = arith.subf %12, %15 : vector<128x1xf32>
    %17 = math.exp %16 : vector<128x1xf32>
    %18 = vector.broadcast %15 : vector<128x1xf32> to vector<128x128xf32>
    %19 = arith.subf %11, %18 : vector<128x128xf32>
    %20 = math.exp %19 : vector<128x128xf32>
    %c0_11 = arith.constant 0 : index
    %c0_12 = arith.constant 0 : index
    %21 = vector.load %arg13[%c0_11, %c0_12] : memref<128x1xf32, #tpu.memory_space<vmem>>, vector<128x1xf32>
    tpu.vector_store %arg13[%c0_11, %c0_12], %15 {strides = array<i32>} : memref<128x1xf32, #tpu.memory_space<vmem>>, vector<128x1xf32>,
    %c0_13 = arith.constant 0 : index
    %c0_14 = arith.constant 0 : index
    %22 = vector.load %arg14[%c0_13, %c0_14] : memref<128x1xf32, #tpu.memory_space<vmem>>, vector<128x1xf32>
    %23 = arith.mulf %17, %22 : vector<128x1xf32>
    %cst_15 = arith.constant dense<0.000000e+00> : vector<128xf32>
    %24 = vector.multi_reduction <add>, %20, %cst_15 [1] : vector<128x128xf32> to vector<128xf32>
    %25 = vector.shape_cast %24 : vector<128xf32> to vector<128x1xf32>
    %26 = arith.addf %23, %25 : vector<128x1xf32>
    %c0_16 = arith.constant 0 : index
    %c0_17 = arith.constant 0 : index
    %27 = vector.load %arg14[%c0_16, %c0_17] : memref<128x1xf32, #tpu.memory_space<vmem>>, vector<128x1xf32>
    tpu.vector_store %arg14[%c0_16, %c0_17], %26 {strides = array<i32>} : memref<128x1xf32, #tpu.memory_space<vmem>>, vector<128x1xf32>,
    %c0_18 = arith.constant 0 : index
    %c0_19 = arith.constant 0 : index
    %28 = vector.load %arg9[%c0_18, %c0_19] : memref<32x32xbf16, #tpu.memory_space<vmem>>, vector<32x32xbf16>
    %cst_20 = arith.constant dense<0.000000e+00> : vector<32x128xf32>
    %29 = tpu.matmul %28, %9, %cst_20 {dimension_numbers = #tpu.dot_dimension_numbers<[1], [0], [0], [1], [0, 0, 1, 1], [], []>} : vector<32x32xbf16>, vector<32x128xbf16>, vector<32x128xf32> -> vector<32x128xf32>
    %30 = arith.truncf %29 : vector<32x128xf32> to vector<32x128xbf16>
    %c0_21 = arith.constant 0 : index
    %c0_22 = arith.constant 0 : index
    %31 = vector.load %arg15[%c0_21, %c0_22] : memref<128x32xf32, #tpu.memory_space<vmem>>, vector<128x32xf32>
    %32 = vector.broadcast %17 : vector<128x1xf32> to vector<128x32xf32>
    %33 = arith.mulf %31, %32 : vector<128x32xf32>
    %34 = arith.truncf %20 : vector<128x128xf32> to vector<128x128xbf16>
    %cst_23 = arith.constant dense<0.000000e+00> : vector<128x32xf32>
    %35 = tpu.matmul %34, %30, %cst_23 {dimension_numbers = #tpu.dot_dimension_numbers<[1], [1], [0], [0], [0, 0, 1, 0], [], []>} : vector<128x128xbf16>, vector<32x128xbf16>, vector<128x32xf32> -> vector<128x32xf32>
    %36 = arith.addf %33, %35 : vector<128x32xf32>
    %c0_24 = arith.constant 0 : index
    %c0_25 = arith.constant 0 : index
    %37 = vector.load %arg15[%c0_24, %c0_25] : memref<128x32xf32, #tpu.memory_space<vmem>>, vector<128x32xf32>
    tpu.vector_store %arg15[%c0_24, %c0_25], %36 {strides = array<i32>} : memref<128x32xf32, #tpu.memory_space<vmem>>, vector<128x32xf32>,
    %c1_i32 = arith.constant 1 : i32
    %38 = arith.cmpi eq, %arg2, %c1_i32 : i32
    %39 = arith.extui %38 : i1 to i32
    %c0_i32_26 = arith.constant 0 : i32
    %40 = arith.cmpi ne, %39, %c0_i32_26 : i32
    scf.if %40 {
      %c0_27 = arith.constant 0 : index
      %c0_28 = arith.constant 0 : index
      %41 = vector.load %arg14[%c0_27, %c0_28] : memref<128x1xf32, #tpu.memory_space<vmem>>, vector<128x1xf32>
      %42 = tpu.reciprocal %41 {approx = true} : vector<128x1xf32> -> vector<128x1xf32>
      %c0_29 = arith.constant 0 : index
      %c0_30 = arith.constant 0 : index
      %43 = vector.load %arg15[%c0_29, %c0_30] : memref<128x32xf32, #tpu.memory_space<vmem>>, vector<128x32xf32>
      %44 = vector.broadcast %42 : vector<128x1xf32> to vector<128x32xf32>
      %45 = arith.mulf %43, %44 : vector<128x32xf32>
      %46 = tpu.transpose %45, [1, 0] : vector<128x32xf32> -> vector<32x128xf32>
      %c0_31 = arith.constant 0 : index
      %c0_32 = arith.constant 0 : index
      %47 = vector.load %arg10[%c0_31, %c0_32] : memref<32x1xf32, #tpu.memory_space<vmem>>, vector<32x1xf32>
      %48 = vector.broadcast %47 : vector<32x1xf32> to vector<32x128xf32>
      %49 = arith.addf %46, %48 : vector<32x128xf32>
      %c0_33 = arith.constant 0 : index
      %c0_34 = arith.constant 0 : index
      %c0_35 = arith.constant 0 : index
      %50 = vector.load %arg3[%c0_33, %c0_34, %c0_35] : memref<1x32x128xf32, #tpu.memory_space<vmem>>, vector<1x32x128xf32>
      %51 = vector.shape_cast %50 : vector<1x32x128xf32> to vector<32x128xf32>
      %52 = arith.addf %49, %51 : vector<32x128xf32>
      %c0_36 = arith.constant 0 : index
      %c0_37 = arith.constant 0 : index
      %c0_38 = arith.constant 0 : index
      %53 = vector.load %arg11[%c0_36, %c0_37, %c0_38] : memref<1x32x128xf32, #tpu.memory_space<vmem>>, vector<1x32x128xf32>
      %54 = vector.shape_cast %53 : vector<1x32x128xf32> to vector<32x128xf32>
      %55 = vector.shape_cast %52 : vector<32x128xf32> to vector<1x32x128xf32>
      tpu.vector_store %arg11[%c0_36, %c0_37, %c0_38], %55 {strides = array<i32>} : memref<1x32x128xf32, #tpu.memory_space<vmem>>, vector<1x32x128xf32>,
    } else {
    }
    return
  }
  func.func @transform_0(%arg0: i32, %arg1: i32, %arg2: i32) -> (i32, i32, i32) {
    %c0_i32 = arith.constant 0 : i32
    %c0_i32_0 = arith.constant 0 : i32
    return %arg0, %c0_i32, %arg1 : i32, i32, i32
  }
  func.func @transform_1(%arg0: i32, %arg1: i32, %arg2: i32) -> (i32, i32, i32) {
    %c0_i32 = arith.constant 0 : i32
    %c0_i32_0 = arith.constant 0 : i32
    return %arg0, %c0_i32, %arg1 : i32, i32, i32
  }
  func.func @transform_2(%arg0: i32, %arg1: i32, %arg2: i32) -> (i32, i32, i32) {
    %c0_i32 = arith.constant 0 : i32
    %c0_i32_0 = arith.constant 0 : i32
    return %arg0, %c0_i32, %arg2 : i32, i32, i32
  }
  func.func @transform_3(%arg0: i32, %arg1: i32, %arg2: i32) -> (i32, i32, i32) {
    %c0_i32 = arith.constant 0 : i32
    %c0_i32_0 = arith.constant 0 : i32
    return %arg0, %c0_i32, %arg2 : i32, i32, i32
  }
  func.func @transform_4(%arg0: i32, %arg1: i32, %arg2: i32) -> (i32, i32) {
    %c0_i32 = arith.constant 0 : i32
    %c0_i32_0 = arith.constant 0 : i32
    %c0_i32_1 = arith.constant 0 : i32
    return %c0_i32, %c0_i32_0 : i32, i32
  }
  func.func @transform_5(%arg0: i32, %arg1: i32, %arg2: i32) -> (i32, i32) {
    %c0_i32 = arith.constant 0 : i32
    %c0_i32_0 = arith.constant 0 : i32
    %c0_i32_1 = arith.constant 0 : i32
    return %c0_i32, %c0_i32_0 : i32, i32
  }
  func.func @transform_6(%arg0: i32, %arg1: i32, %arg2: i32) -> (i32, i32) {
    %c0_i32 = arith.constant 0 : i32
    %c0_i32_0 = arith.constant 0 : i32
    %c0_i32_1 = arith.constant 0 : i32
    return %c0_i32, %c0_i32_0 : i32, i32
  }
  func.func @transform_7(%arg0: i32, %arg1: i32, %arg2: i32) -> (i32, i32) {
    %c0_i32 = arith.constant 0 : i32
    %c0_i32_0 = arith.constant 0 : i32
    %c0_i32_1 = arith.constant 0 : i32
    return %c0_i32, %c0_i32_0 : i32, i32
  }
  func.func @transform_8(%arg0: i32, %arg1: i32, %arg2: i32) -> (i32, i32, i32) {
    %c0_i32 = arith.constant 0 : i32
    %c0_i32_0 = arith.constant 0 : i32
    return %arg0, %c0_i32, %arg1 : i32, i32, i32
  }
}

</mosaic_0001>

<llo_original>
// kernel: tpu_custom_call.1
$region0: #{tpu_custom_call.1}
  #allocation0 [shape = 'u32[]', space=smem, size = 0x4, offset = 0x4, fixed_abs, tag = 'smem constant byte address 0x4 - core index']
  #allocation1 [shape = 'u32[144,128]{1,0:T(1,128)}', space=vmem, size = 0x12000, scoped, tag = 'internal scratch']
  #allocation2 [shape = 'bf16[128,32]{1,0:T(16,128)(2,1)}', space=vmem, size = 0x8000, scoped, tag = 'scratch operand']
  #allocation3 [shape = 'f32[128,1]{1,0:T(8,128)}', space=vmem, size = 0x10000, scoped, tag = 'scratch operand']
  #allocation4 [shape = 'f32[128,1]{1,0:T(8,128)}', space=vmem, size = 0x10000, scoped, tag = 'scratch operand']
  #allocation5 [shape = 'f32[128,32]{1,0:T(8,128)}', space=vmem, size = 0x10000, scoped, tag = 'scratch operand']
  %s0 = inlined_call_operand.hbm [shape: f32[2,32,256], index: 0, kind: input, shape index: {}]
  %s1 = inlined_call_operand.vmem [shape: f32[2,1,256], index: 1, kind: input, shape index: {}]
  %s2 = inlined_call_operand.hbm [shape: f32[2,32,256], index: 2, kind: input, shape index: {}]
  %s3 = inlined_call_operand.vmem [shape: f32[2,1,256], index: 3, kind: input, shape index: {}]
  %s4 = inlined_call_operand.vmem [shape: bf16[32,32], index: 4, kind: input, shape index: {}]
  %s5 = inlined_call_operand.vmem [shape: bf16[32,1], index: 5, kind: input, shape index: {}]
  %s6 = inlined_call_operand.vmem [shape: bf16[32,32], index: 6, kind: input, shape index: {}]
  %s7 = inlined_call_operand.vmem [shape: f32[32,1], index: 7, kind: input, shape index: {}]
  %s8 = inlined_call_operand.hbm [shape: f32[2,32,256], index: 8, kind: output, shape index: {}]
  %s9 = sld [smem:[#allocation0]]
  $region81: #{tpu_custom_call.1} parent=0
    _
  %s11 = ssub.s32 1, %s9
  %s12 = scalar_select 0, %s11, %s9
  $region1: #{tpu_custom_call.1} parent=0
    #allocation6 [shape = 'u8[32768]{0}', space=vmem, size = 0x8000, scoped, tag = 'input window, operand 0']
    #allocation7 [shape = 's32[2]{0}', space=sflag, size = 0x8, scoped, tag = 'scoped memory for tpu_custom_call.1']
    #allocation8 [shape = 's32[2]{0}', space=sflag, size = 0x8, scoped, tag = 'scoped memory for tpu_custom_call.1']
    #allocation9 [shape = 'u8[32768]{0}', space=vmem, size = 0x8000, scoped, tag = 'input window, operand 2']
    #allocation10 [shape = 's32[2]{0}', space=sflag, size = 0x8, scoped, tag = 'scoped memory for tpu_custom_call.1']
    #allocation11 [shape = 'u8[32768]{0}', space=vmem, size = 0x8000, scoped, tag = 'output window, operand 0']
    %13 = vsyncpa [#allocation7], 0
    %s14 = scalar_lea.sflag [#allocation7], 1
    %15 = vsyncpa %s14, 0
    %16 = vsyncpa [#allocation10], 0
    %s17 = scalar_lea.sflag [#allocation10], 1
    %18 = vsyncpa %s17, 0
    %19 = vsyncpa [#allocation8], 0
    %s20 = scalar_lea.sflag [#allocation8], 1
    %21 = vsyncpa %s20, 0
    loop: start=0, step=1, limit=10
    $region2: #{tpu_custom_call.1} parent=1 // loop_pre_header
      _
    $region3: #{tpu_custom_call.1} parent=1 // loop_header
      %s23 = sphi 0, %s27
      %p24 = scmp.ge.s32.totalorder %s23, 10
      %s30 = sphi 0, %s49
      %s31 = sphi 0, %s45
      %s32 = sphi 0, %s41
      %s33 = sphi 0, %s30
      %s34 = sphi 0, %s31
      %s35 = sphi 0, %s32
      %s36 = sphi 0, %s33
      %s37 = sphi 0, %s34
      %s38 = sphi 0, %s35
      %s54 = sphi 0, %s56
      %s57 = sphi 0, %s54
      %s58 = sphi 0, %s57
      %s74 = sphi 0, %s58
      %s82 = sphi 0, %s84
      %s85 = sphi 0, %s82
      %s86 = sphi 0, %s85
      %s102 = sphi 0, %s86
      %s110 = sphi 0, %s112
      %s113 = sphi 0, %s110
      %s114 = sphi 0, %s113
      %s130 = sphi 0, %s114
      %s138 = sphi 0, %s140
      %s141 = sphi 0, %s138
      %s142 = sphi 0, %s141
      %s158 = sphi 0, %s142
      %s162 = sphi 0, %s162
      %s164 = sphi 0, %s162
      %s165 = sphi 0, %s164
      %s179 = sphi 0, %s165
      %s183 = sphi 0, %s183
      %s185 = sphi 0, %s183
      %s186 = sphi 0, %s185
      %s200 = sphi 0, %s186
      %s204 = sphi 0, %s204
      %s206 = sphi 0, %s204
      %s207 = sphi 0, %s206
      %s221 = sphi 0, %s207
      %s225 = sphi 0, %s225
      %s227 = sphi 0, %s225
      %s228 = sphi 0, %s227
      %s242 = sphi 0, %s228
      %s250 = sphi 0, %s252
      %s253 = sphi 0, %s250
      %s254 = sphi 0, %s253
      %s270 = sphi 0, %s254
    $region4: #{tpu_custom_call.1} parent=1 // loop_header_branch
      %26 = sbr.rel (%p24) target = $region8
    $region5: #{tpu_custom_call.1} parent=1 // loop_body
      %s28 = ssub.s32 %s23, 1
      %s29 = ssub.s32 %s23, 2
      %s39 = sadd.s32 1, %s32
      %p40 = scmp.ge.s32.totalorder %s39, 2
      %s41 = scalar_select %p40, 0, %s39
      %s42 = sadd.s32 1, %s31
      %s43 = scalar_select %p40, %s42, %s31
      %p44 = scmp.ge.s32.totalorder %s43, 2
      %s45 = scalar_select %p44, 0, %s43
      %s46 = sadd.s32 1, %s30
      %s47 = scalar_select %p44, %s46, %s30
      %p48 = scmp.ge.s32.totalorder %s47, 2
      %s49 = scalar_select %p48, 0, %s47
      %s50 = ssub.s32 %s30, %s49
      %s51 = ssub.s32 %s31, %s45
      %s52 = sor.u32 %s50, %s51
      %p53 = scmp.eq.s32.totalorder %s52, 0
      %s55 = sadd.s32 %s54, 1
      %s56 = scalar_select %p53, %s54, %s55
      %p59 = pneg %p53
      %p60 = scmp.eq.s32.totalorder %s23, 7
      %p61 = por %p59, %p60
      %p62 = scmp.ne.s32.totalorder %s54, %s57
      %p63 = scmp.eq.s32.totalorder %s23, 0
      %p64 = por %p62, %p63
      %p65 = scmp.ne.s32.totalorder %s54, %s57
      %p66 = scmp.eq.s32.totalorder %s28, 7
      %p67 = por %p65, %p66
      %p68 = scmp.ne.s32.totalorder %s57, %s58
      %p69 = scmp.eq.s32.totalorder %s28, 0
      %p70 = por %p68, %p69
      %p71 = scmp.ne.s32.totalorder %s57, %s58
      %p72 = scmp.eq.s32.totalorder %s29, 7
      %p73 = por %p71, %p72
      %p75 = scmp.ne.s32.totalorder %s58, %s74
      %p76 = scmp.eq.s32.totalorder %s29, 0
      %p77 = por %p75, %p76
      %s78 = ssub.s32 %s30, %s49
      %s79 = ssub.s32 %s31, %s45
      %s80 = sor.u32 %s78, %s79
      %p81 = scmp.eq.s32.totalorder %s80, 0
      %s83 = sadd.s32 %s82, 1
      %s84 = scalar_select %p81, %s82, %s83
      %p87 = pneg %p81
      %p88 = scmp.eq.s32.totalorder %s23, 7
      %p89 = por %p87, %p88
      %p90 = scmp.ne.s32.totalorder %s82, %s85
      %p91 = scmp.eq.s32.totalorder %s23, 0
      %p92 = por %p90, %p91
      %p93 = scmp.ne.s32.totalorder %s82, %s85
      %p94 = scmp.eq.s32.totalorder %s28, 7
      %p95 = por %p93, %p94
      %p96 = scmp.ne.s32.totalorder %s85, %s86
      %p97 = scmp.eq.s32.totalorder %s28, 0
      %p98 = por %p96, %p97
      %p99 = scmp.ne.s32.totalorder %s85, %s86
      %p100 = scmp.eq.s32.totalorder %s29, 7
      %p101 = por %p99, %p100
      %p103 = scmp.ne.s32.totalorder %s86, %s102
      %p104 = scmp.eq.s32.totalorder %s29, 0
      %p105 = por %p103, %p104
      %s106 = ssub.s32 %s30, %s49
      %s107 = ssub.s32 %s32, %s41
      %s108 = sor.u32 %s106, %s107
      %p109 = scmp.eq.s32.totalorder %s108, 0
      %s111 = sadd.s32 %s110, 1
      %s112 = scalar_select %p109, %s110, %s111
      %p115 = pneg %p109
      %p116 = scmp.eq.s32.totalorder %s23, 7
      %p117 = por %p115, %p116
      %p118 = scmp.ne.s32.totalorder %s110, %s113
      %p119 = scmp.eq.s32.totalorder %s23, 0
      %p120 = por %p118, %p119
      %p121 = scmp.ne.s32.totalorder %s110, %s113
      %p122 = scmp.eq.s32.totalorder %s28, 7
      %p123 = por %p121, %p122
      %p124 = scmp.ne.s32.totalorder %s113, %s114
      %p125 = scmp.eq.s32.totalorder %s28, 0
      %p126 = por %p124, %p125
      %p127 = scmp.ne.s32.totalorder %s113, %s114
      %p128 = scmp.eq.s32.totalorder %s29, 7
      %p129 = por %p127, %p128
      %p131 = scmp.ne.s32.totalorder %s114, %s130
      %p132 = scmp.eq.s32.totalorder %s29, 0
      %p133 = por %p131, %p132
      %s134 = ssub.s32 %s30, %s49
      %s135 = ssub.s32 %s32, %s41
      %s136 = sor.u32 %s134, %s135
      %p137 = scmp.eq.s32.totalorder %s136, 0
      %s139 = sadd.s32 %s138, 1
      %s140 = scalar_select %p137, %s138, %s139
      %p143 = pneg %p137
      %p144 = scmp.eq.s32.totalorder %s23, 7
      %p145 = por %p143, %p144
      %p146 = scmp.ne.s32.totalorder %s138, %s141
      %p147 = scmp.eq.s32.totalorder %s23, 0
      %p148 = por %p146, %p147
      %p149 = scmp.ne.s32.totalorder %s138, %s141
      %p150 = scmp.eq.s32.totalorder %s28, 7
      %p151 = por %p149, %p150
      %p152 = scmp.ne.s32.totalorder %s141, %s142
      %p153 = scmp.eq.s32.totalorder %s28, 0
      %p154 = por %p152, %p153
      %p155 = scmp.ne.s32.totalorder %s141, %s142
      %p156 = scmp.eq.s32.totalorder %s29, 7
      %p157 = por %p155, %p156
      %p159 = scmp.ne.s32.totalorder %s142, %s158
      %p160 = scmp.eq.s32.totalorder %s29, 0
      %p161 = por %p159, %p160
      %s163 = sadd.s32 %s162, 1
      %p166 = scmp.eq.s32.totalorder %s23, 7
      %p167 = scmp.ne.s32.totalorder %s162, %s164
      %p168 = scmp.eq.s32.totalorder %s23, 0
      %p169 = por %p167, %p168
      %p170 = scmp.ne.s32.totalorder %s162, %s164
      %p171 = scmp.eq.s32.totalorder %s28, 7
      %p172 = por %p170, %p171
      %p173 = scmp.ne.s32.totalorder %s164, %s165
      %p174 = scmp.eq.s32.totalorder %s28, 0
      %p175 = por %p173, %p174
      %p176 = scmp.ne.s32.totalorder %s164, %s165
      %p177 = scmp.eq.s32.totalorder %s29, 7
      %p178 = por %p176, %p177
      %p180 = scmp.ne.s32.totalorder %s165, %s179
      %p181 = scmp.eq.s32.totalorder %s29, 0
      %p182 = por %p180, %p181
      %s184 = sadd.s32 %s183, 1
      %p187 = scmp.eq.s32.totalorder %s23, 7
      %p188 = scmp.ne.s32.totalorder %s183, %s185
      %p189 = scmp.eq.s32.totalorder %s23, 0
      %p190 = por %p188, %p189
      %p191 = scmp.ne.s32.totalorder %s183, %s185
      %p192 = scmp.eq.s32.totalorder %s28, 7
      %p193 = por %p191, %p192
      %p194 = scmp.ne.s32.totalorder %s185, %s186
      %p195 = scmp.eq.s32.totalorder %s28, 0
      %p196 = por %p194, %p195
      %p197 = scmp.ne.s32.totalorder %s185, %s186
      %p198 = scmp.eq.s32.totalorder %s29, 7
      %p199 = por %p197, %p198
      %p201 = scmp.ne.s32.totalorder %s186, %s200
      %p202 = scmp.eq.s32.totalorder %s29, 0
      %p203 = por %p201, %p202
      %s205 = sadd.s32 %s204, 1
      %p208 = scmp.eq.s32.totalorder %s23, 7
      %p209 = scmp.ne.s32.totalorder %s204, %s206
      %p210 = scmp.eq.s32.totalorder %s23, 0
      %p211 = por %p209, %p210
      %p212 = scmp.ne.s32.totalorder %s204, %s206
      %p213 = scmp.eq.s32.totalorder %s28, 7
      %p214 = por %p212, %p213
      %p215 = scmp.ne.s32.totalorder %s206, %s207
      %p216 = scmp.eq.s32.totalorder %s28, 0
      %p217 = por %p215, %p216
      %p218 = scmp.ne.s32.totalorder %s206, %s207
      %p219 = scmp.eq.s32.totalorder %s29, 7
      %p220 = por %p218, %p219
      %p222 = scmp.ne.s32.totalorder %s207, %s221
      %p223 = scmp.eq.s32.totalorder %s29, 0
      %p224 = por %p222, %p223
      %s226 = sadd.s32 %s225, 1
      %p229 = scmp.eq.s32.totalorder %s23, 7
      %p230 = scmp.ne.s32.totalorder %s225, %s227
      %p231 = scmp.eq.s32.totalorder %s23, 0
      %p232 = por %p230, %p231
      %p233 = scmp.ne.s32.totalorder %s225, %s227
      %p234 = scmp.eq.s32.totalorder %s28, 7
      %p235 = por %p233, %p234
      %p236 = scmp.ne.s32.totalorder %s227, %s228
      %p237 = scmp.eq.s32.totalorder %s28, 0
      %p238 = por %p236, %p237
      %p239 = scmp.ne.s32.totalorder %s227, %s228
      %p240 = scmp.eq.s32.totalorder %s29, 7
      %p241 = por %p239, %p240
      %p243 = scmp.ne.s32.totalorder %s228, %s242
      %p244 = scmp.eq.s32.totalorder %s29, 0
      %p245 = por %p243, %p244
      %s246 = ssub.s32 %s30, %s49
      %s247 = ssub.s32 %s31, %s45
      %s248 = sor.u32 %s246, %s247
      %p249 = scmp.eq.s32.totalorder %s248, 0
      %s251 = sadd.s32 %s250, 1
      %s252 = scalar_select %p249, %s250, %s251
      %p255 = pneg %p249
      %p256 = scmp.eq.s32.totalorder %s23, 7
      %p257 = por %p255, %p256
      %p258 = scmp.ne.s32.totalorder %s250, %s253
      %p259 = scmp.eq.s32.totalorder %s23, 0
      %p260 = por %p258, %p259
      %p261 = scmp.ne.s32.totalorder %s250, %s253
      %p262 = scmp.eq.s32.totalorder %s28, 7
      %p263 = por %p261, %p262
      %p264 = scmp.ne.s32.totalorder %s253, %s254
      %p265 = scmp.eq.s32.totalorder %s28, 0
      %p266 = por %p264, %p265
      %p267 = scmp.ne.s32.totalorder %s253, %s254
      %p268 = scmp.eq.s32.totalorder %s29, 7
      %p269 = por %p267, %p268
      %p271 = scmp.ne.s32.totalorder %s254, %s270
      %p272 = scmp.eq.s32.totalorder %s29, 0
      %p273 = por %p271, %p272
      %p274 = scmp.le.s32.totalorder 1, %s23
      %p275 = scmp.lt.s32.totalorder %s23, 9
      %p276 = pnand %p274, %p275
      %p277 = pneg %p276
      // Predicated region
      $region9: #{tpu_custom_call.1} parent=5 // pred_check
        _
      $region10: #{tpu_custom_call.1} parent=5 // pred_check_branch
        %279 = sbr.rel (%p276) target = $region12
      $region11: #{tpu_custom_call.1} parent=5 // pred_region
        %s280 = ssub.s32 %s23, 1
        // Predicated region
        $region13: #{tpu_custom_call.1} parent=11 // pred_check
          %p281 = pneg %p175
        $region14: #{tpu_custom_call.1} parent=11 // pred_check_branch
          %283 = sbr.rel (%p281) target = $region16
        $region15: #{tpu_custom_call.1} parent=11 // pred_region
          _
        $region16: #{tpu_custom_call.1} parent=11 // pred_fallthru
          _
        // Predicated region
        $region17: #{tpu_custom_call.1} parent=11 // pred_check
          %p284 = pneg %p196
        $region18: #{tpu_custom_call.1} parent=11 // pred_check_branch
          %286 = sbr.rel (%p284) target = $region20
        $region19: #{tpu_custom_call.1} parent=11 // pred_region
          _
        $region20: #{tpu_custom_call.1} parent=11 // pred_fallthru
          _
        // Predicated region
        $region21: #{tpu_custom_call.1} parent=11 // pred_check
          %p287 = pneg %p217
        $region22: #{tpu_custom_call.1} parent=11 // pred_check_branch
          %289 = sbr.rel (%p287) target = $region24
        $region23: #{tpu_custom_call.1} parent=11 // pred_region
          _
        $region24: #{tpu_custom_call.1} parent=11 // pred_fallthru
          _
        // Predicated region
        $region25: #{tpu_custom_call.1} parent=11 // pred_check
          %p290 = pneg %p238
        $region26: #{tpu_custom_call.1} parent=11 // pred_check_branch
          %292 = sbr.rel (%p290) target = $region28
        $region27: #{tpu_custom_call.1} parent=11 // pred_region
          _
        $region28: #{tpu_custom_call.1} parent=11 // pred_fallthru
          _
      $region12: #{tpu_custom_call.1} parent=5 // pred_fallthru
        _
      %p293 = scmp.lt.s32.totalorder %s23, 8
      // Predicated region
      $region29: #{tpu_custom_call.1} parent=5 // pred_check
        %p294 = pneg %p293
      $region30: #{tpu_custom_call.1} parent=5 // pred_check_branch
        %296 = sbr.rel (%p294) target = $region32
      $region31: #{tpu_custom_call.1} parent=5 // pred_region
        // Predicated region
        $region33: #{tpu_custom_call.1} parent=31 // pred_check
          %p297 = pneg %p64
        $region34: #{tpu_custom_call.1} parent=31 // pred_check_branch
          %299 = sbr.rel (%p297) target = $region36
        $region35: #{tpu_custom_call.1} parent=31 // pred_region
          %s300 = sand.u32 %s54, 1
          %s301 = scalar_lea.sflag [#allocation7], %s300
          %s302 = sand.u32 %s54, 1
          %s303 = smul.addr %s302, 32
          %s304 = scalar_lea.vmem [#allocation6], %s303
          %s306 = ssub.s32 512, 512
          %307 = vsyncadd %s301, %s306
          %s308 = smul.addr %s30, 8
          %s309 = sadd.s32 %s31, %s308
          %s310 = smul.addr %s309, 128
          %s311 = scalar_lea.hbm %s0, %s310
          %s312 = sshll.u32 %s304, 4
          %s313 = int_to_ptr.vmem [resolvable:$true] %s312
          %318 = dma.hbm_to_vmem [thread:$0]  %s311, 512, %s313, %s301, 256, 128, 8
        $region36: #{tpu_custom_call.1} parent=31 // pred_fallthru
          _
        // Predicated region
        $region37: #{tpu_custom_call.1} parent=31 // pred_check
          %p319 = pneg %p92
        $region38: #{tpu_custom_call.1} parent=31 // pred_check_branch
          %321 = sbr.rel (%p319) target = $region40
        $region39: #{tpu_custom_call.1} parent=31 // pred_region
          %p322 = scmp.lt.s32.totalorder %s30, 1
          %s323 = scalar_select %p322, %s30, 1
          %p324 = scmp.lt.s32.totalorder %s31, 1
          %s325 = scalar_select %p324, %s31, 1
          %s326 = smul.addr %s323, 2
          %s327 = sadd.s32 %s325, %s326
          %s328 = scalar_lea.vmem %s1, %s327
        $region40: #{tpu_custom_call.1} parent=31 // pred_fallthru
          _
        // Predicated region
        $region41: #{tpu_custom_call.1} parent=31 // pred_check
          %p329 = pneg %p120
        $region42: #{tpu_custom_call.1} parent=31 // pred_check_branch
          %331 = sbr.rel (%p329) target = $region44
        $region43: #{tpu_custom_call.1} parent=31 // pred_region
          %s332 = sand.u32 %s110, 1
          %s333 = scalar_lea.sflag [#allocation10], %s332
          %s334 = sand.u32 %s110, 1
          %s335 = smul.addr %s334, 32
          %s336 = scalar_lea.vmem [#allocation9], %s335
          %s338 = ssub.s32 512, 512
          %339 = vsyncadd %s333, %s338
          %s340 = smul.addr %s30, 8
          %s341 = sadd.s32 %s32, %s340
          %s342 = smul.addr %s341, 128
          %s343 = scalar_lea.hbm %s2, %s342
          %s344 = sshll.u32 %s336, 4
          %s345 = int_to_ptr.vmem [resolvable:$true] %s344
          %350 = dma.hbm_to_vmem [thread:$0]  %s343, 512, %s345, %s333, 256, 128, 8
        $region44: #{tpu_custom_call.1} parent=31 // pred_fallthru
          _
        // Predicated region
        $region45: #{tpu_custom_call.1} parent=31 // pred_check
          %p351 = pneg %p148
        $region46: #{tpu_custom_call.1} parent=31 // pred_check_branch
          %353 = sbr.rel (%p351) target = $region48
        $region47: #{tpu_custom_call.1} parent=31 // pred_region
          %p354 = scmp.lt.s32.totalorder %s30, 1
          %s355 = scalar_select %p354, %s30, 1
          %p356 = scmp.lt.s32.totalorder %s32, 1
          %s357 = scalar_select %p356, %s32, 1
          %s358 = smul.addr %s355, 2
          %s359 = sadd.s32 %s357, %s358
          %s360 = scalar_lea.vmem %s3, %s359
        $region48: #{tpu_custom_call.1} parent=31 // pred_fallthru
          _
      $region32: #{tpu_custom_call.1} parent=5 // pred_fallthru
        _
      %p361 = scmp.le.s32.totalorder 1, %s23
      %p362 = scmp.lt.s32.totalorder %s23, 9
      %p363 = pnand %p361, %p362
      %p364 = pneg %p363
      // Predicated region
      $region49: #{tpu_custom_call.1} parent=5 // pred_check
        _
      $region50: #{tpu_custom_call.1} parent=5 // pred_check_branch
        %366 = sbr.rel (%p363) target = $region52
      $region51: #{tpu_custom_call.1} parent=5 // pred_region
        %s367 = ssub.s32 %s23, 1
        %s368 = sand.u32 %s57, 1
        %s369 = scalar_lea.sflag [#allocation7], %s368
        %s370 = sand.u32 %s57, 1
        %s371 = smul.addr %s370, 32
        %s372 = scalar_lea.vmem [#allocation6], %s371
        // Predicated region
        $region53: #{tpu_custom_call.1} parent=51 // pred_check
          %p373 = pneg %p70
        $region54: #{tpu_custom_call.1} parent=51 // pred_check_branch
          %375 = sbr.rel (%p373) target = $region56
        $region55: #{tpu_custom_call.1} parent=51 // pred_region
          %376 = dma.done %s369, 512
        $region56: #{tpu_custom_call.1} parent=51 // pred_fallthru
          _
        %s377 = sand.u32 %s113, 1
        %s378 = scalar_lea.sflag [#allocation10], %s377
        %s379 = sand.u32 %s113, 1
        %s380 = smul.addr %s379, 32
        %s381 = scalar_lea.vmem [#allocation9], %s380
        // Predicated region
        $region57: #{tpu_custom_call.1} parent=51 // pred_check
          %p382 = pneg %p126
        $region58: #{tpu_custom_call.1} parent=51 // pred_check_branch
          %384 = sbr.rel (%p382) target = $region60
        $region59: #{tpu_custom_call.1} parent=51 // pred_region
          %385 = dma.done %s378, 512
        $region60: #{tpu_custom_call.1} parent=51 // pred_fallthru
          _
        %s386 = sand.u32 %s57, 1
        %s387 = scalar_lea.sflag [#allocation7], %s386
        %s388 = sand.u32 %s57, 1
        %s389 = smul.addr %s388, 32
        %s390 = scalar_lea.vmem [#allocation6], %s389
        %p391 = pneg %p70
        %p392 = pneg %p67
        %p393 = scmp.lt.s32.totalorder %s33, 1
        %s394 = scalar_select %p393, %s33, 1
        %p395 = scmp.lt.s32.totalorder %s34, 1
        %s396 = scalar_select %p395, %s34, 1
        %s397 = smul.addr %s394, 2
        %s398 = sadd.s32 %s396, %s397
        %s399 = scalar_lea.vmem %s1, %s398
        %p400 = pneg %p98
        %p401 = pneg %p95
        %s402 = sand.u32 %s113, 1
        %s403 = scalar_lea.sflag [#allocation10], %s402
        %s404 = sand.u32 %s113, 1
        %s405 = smul.addr %s404, 32
        %s406 = scalar_lea.vmem [#allocation9], %s405
        %p407 = pneg %p126
        %p408 = pneg %p123
        %p409 = scmp.lt.s32.totalorder %s33, 1
        %s410 = scalar_select %p409, %s33, 1
        %p411 = scmp.lt.s32.totalorder %s35, 1
        %s412 = scalar_select %p411, %s35, 1
        %s413 = smul.addr %s410, 2
        %s414 = sadd.s32 %s412, %s413
        %s415 = scalar_lea.vmem %s3, %s414
        %p416 = pneg %p154
        %p417 = pneg %p151
        %p418 = pneg %p175
        %p419 = pneg %p172
        %p420 = pneg %p196
        %p421 = pneg %p193
        %p422 = pneg %p217
        %p423 = pneg %p214
        %p424 = pneg %p238
        %p425 = pneg %p235
        %p426 = pneg %p266
        %p427 = pneg %p263
        %s428 = sand.u32 %s253, 1
        %s429 = scalar_lea.sflag [#allocation8], %s428
        %s430 = sand.u32 %s253, 1
        %s431 = smul.addr %s430, 32
        %s432 = scalar_lea.vmem [#allocation11], %s431
        %p433 = scmp.lt.s32.totalorder %s33, 1
        %s434 = scalar_select %p433, %s33, 1
        %p435 = scmp.lt.s32.totalorder %s34, 1
        %s436 = scalar_select %p435, %s34, 1
        %s437 = smul.addr %s434, 2
        %s438 = sadd.s32 %s436, %s437
        %s439 = scalar_lea.vmem %s1, %s438
        %p440 = scmp.lt.s32.totalorder %s33, 1
        %s441 = scalar_select %p440, %s33, 1
        %p442 = scmp.lt.s32.totalorder %s35, 1
        %s443 = scalar_select %p442, %s35, 1
        %s444 = smul.addr %s441, 2
        %s445 = sadd.s32 %s443, %s444
        %s446 = scalar_lea.vmem %s3, %s445
        %p448 = scmp.eq.s32.totalorder %s35, 0
        // Predicated region
        $region61: #{tpu_custom_call.1} parent=51 // pred_check
          %p449 = pneg %p448
        $region62: #{tpu_custom_call.1} parent=51 // pred_check_branch
          %451 = sbr.rel (%p449) target = $region64
        $region63: #{tpu_custom_call.1} parent=51 // pred_region
          %v452 = vld [vmem:[%s372] sm:$0xff]
          %v453 = vld [vmem:[%s372 + $0x8] sm:$0xff]
          %v454 = vld [vmem:[%s372 + $0x10] sm:$0xff]
          %v455 = vld [vmem:[%s372 + $0x18] sm:$0xff]
          %v456 = vld [vmem:[%s439] sm:$0x1]
          %v458 = vlaneseq
          %v459 = vshrl.u32 %v458, 7
          %v460 = vsub.s32 0, %v459
          %v461 = vrot.slane %v456, %v460
          %v463 = vmul.f32 %v452, %v461
          %v464 = vmul.f32 %v453, %v461
          %v465 = vmul.f32 %v454, %v461
          %v466 = vmul.f32 %v455, %v461
          %v467 = vpack.c.bf16 %v464, %v463
          %v468 = vpack.c.bf16 %v466, %v465
          %v469 = vld [vmem:[%s4] sm:$0xf]
          %v470 = vld [vmem:[%s4 + $0x4] sm:$0xf]
          %v471 = vld [vmem:[%s4 + $0x8] sm:$0xf]
          %v472 = vld [vmem:[%s4 + $0xc] sm:$0xf]
          %v473 = vld [vmem:[%s5] sm:$0xf]
          %v474 = vld [vmem:[%s5 + $0x4] sm:$0xf]
          %v475 = vld [vmem:[%s5 + $0x8] sm:$0xf]
          %v476 = vld [vmem:[%s5 + $0xc] sm:$0xf]
          %v477 = vunpack.c.l.bf16 %v473
          %v478 = vunpack.c.l.bf16 %v474
          %v479 = vunpack.c.l.bf16 %v475
          %v480 = vunpack.c.l.bf16 %v476
          %482 = vset.pattern.permute.xlu0 0
          %483 = vperm.xlu0 %482, %v477
          %v484 = vpop.permute.xlu0 %483
          %487 = vset.pattern.permute.xlu0 0
          %488 = vperm.xlu0 %487, %v478
          %v489 = vpop.permute.xlu0 %488
          %492 = vset.pattern.permute.xlu0 0
          %493 = vperm.xlu0 %492, %v479
          %v494 = vpop.permute.xlu0 %493
          %497 = vset.pattern.permute.xlu0 0
          %498 = vperm.xlu0 %497, %v480
          %v499 = vpop.permute.xlu0 %498
          %v505 = vunpack.c.l.b16 %v469
          %v506 = vunpack.c.l.b16 %v470
          %v507 = vunpack.c.l.b16 %v471
          %v508 = vunpack.c.l.b16 %v472
          %v509 = vpack.c.b16 %v506, %v505
          %v510 = vpack.c.b16 %v508, %v507
          %vm511 = vcmask 261120
          %v513 = vsel %vm511, %v509, 0
          %v516 = vsel %vm511, %v510, 0
          %518 = vmatprep.subr.bf16.mxu0 0
          %519 = vmatpush1.bf16.msra.mxu0 %v467
          %520 = vmatprep.subr.bf16.mxu0 0
          %521 = vmatpush1.bf16.msra.mxu0 %v468
          %522 = vmatprep.subr.bf16.mxu0 0
          %523 = vmatpush1.bf16.msra.mxu0 0
          %524 = vmatprep.subr.bf16.mxu0 0
          %525 = vmatpush1.bf16.msra.mxu0 0
          %526 = vmatprep.subr.bf16.mxu0 0
          %527 = vmatpush1.bf16.msra.mxu0 0
          %528 = vmatprep.subr.bf16.mxu0 0
          %529 = vmatpush1.bf16.msra.mxu0 0
          %530 = vmatprep.subr.bf16.mxu0 0
          %531 = vmatpush1.bf16.msra.mxu0 0
          %532 = vmatprep.subr.bf16.mxu0 0
          %533 = vmatpush1.bf16.msra.mxu0 0
          %534 = vmatprep.subr.bf16.mxu0 0
          %535 = vmatpush1.bf16.msra.mxu0 0
          %536 = vmatprep.subr.bf16.mxu0 0
          %537 = vmatpush1.bf16.msra.mxu0 0
          %538 = vmatprep.subr.bf16.mxu0 0
          %539 = vmatpush1.bf16.msra.mxu0 0
          %540 = vmatprep.subr.bf16.mxu0 0
          %541 = vmatpush1.bf16.msra.mxu0 0
          %542 = vmatprep.subr.bf16.mxu0 0
          %543 = vmatpush1.bf16.msra.mxu0 0
          %544 = vmatprep.subr.bf16.mxu0 0
          %545 = vmatpush1.bf16.msra.mxu0 0
          %546 = vmatprep.subr.bf16.mxu0 0
          %547 = vmatpush1.bf16.msra.mxu0 0
          %548 = vmatprep.subr.bf16.mxu0 0
          %549 = vmatpush1.bf16.msra.mxu0 0
          %550 = vmatprep.mubr.bf16.mxu0 0
          %551 = vmatmul.mubr.bf16.gmra.mrb[0].mxu0 %v513
          %v552 = vpop.f32.mrb[0].mxu0
          %v553 = vadd.f32 %v484, %v552
          %v554 = vpop.f32.mrb[0].mxu0
          %v555 = vpop.f32.mrb[0].mxu0
          %v556 = vadd.f32 %v489, %v555
          %v557 = vpop.f32.mrb[0].mxu0
          %558 = vmatprep.mubr.bf16.mxu0 0
          %559 = vmatmul.mubr.bf16.gmra.mrb[0].mxu0 %v516
          %v560 = vpop.f32.mrb[0].mxu0
          %v561 = vadd.f32 %v494, %v560
          %v562 = vpop.f32.mrb[0].mxu0
          %v563 = vpop.f32.mrb[0].mxu0
          %v564 = vadd.f32 %v499, %v563
          %v565 = vpop.f32.mrb[0].mxu0
          %566 = vdwg.mxu0
          %567 = vxpose.xlu0.b32.start [1/16] %v553, 128
          %568 = vxpose.xlu0.b32.cont [2/16] %v556, 128
          %569 = vxpose.xlu0.b32.cont [3/16] %v561, 128
          %570 = vxpose.xlu0.b32.cont [4/16] %v564, 128
          %571 = vxpose.xlu0.b32.cont [5/16] 0.0, 128
          %572 = vxpose.xlu0.b32.cont [6/16] 0.0, 128
          %573 = vxpose.xlu0.b32.cont [7/16] 0.0, 128
          %574 = vxpose.xlu0.b32.cont [8/16] 0.0, 128
          %575 = vxpose.xlu0.b32.cont [9/16] 0.0, 128
          %576 = vxpose.xlu0.b32.cont [10/16] 0.0, 128
          %577 = vxpose.xlu0.b32.cont [11/16] 0.0, 128
          %578 = vxpose.xlu0.b32.cont [12/16] 0.0, 128
          %579 = vxpose.xlu0.b32.cont [13/16] 0.0, 128
          %580 = vxpose.xlu0.b32.cont [14/16] 0.0, 128
          %581 = vxpose.xlu0.b32.cont [15/16] 0.0, 128
          %582 = vxpose.xlu0.b32.end [16/16] 0.0, 128
          %v583 = vpop.trf.xlu0
          %v584 = vpop.trf.xlu0
          %v585 = vpop.trf.xlu0
          %v586 = vpop.trf.xlu0
          %v587 = vpop.trf.xlu0
          %v588 = vpop.trf.xlu0
          %v589 = vpop.trf.xlu0
          %v590 = vpop.trf.xlu0
          %v591 = vpop.trf.xlu0
          %v592 = vpop.trf.xlu0
          %v593 = vpop.trf.xlu0
          %v594 = vpop.trf.xlu0
          %v595 = vpop.trf.xlu0
          %v596 = vpop.trf.xlu0
          %v597 = vpop.trf.xlu0
          %v598 = vpop.trf.xlu0
          %v599 = vpack.c.bf16 %v584, %v583
          %v600 = vpack.c.bf16 %v586, %v585
          %v601 = vpack.c.bf16 %v588, %v587
          %v602 = vpack.c.bf16 %v590, %v589
          %v603 = vpack.c.bf16 %v592, %v591
          %v604 = vpack.c.bf16 %v594, %v593
          %v605 = vpack.c.bf16 %v596, %v595
          %v606 = vpack.c.bf16 %v598, %v597
          %607 = vst.msk [vmem:[#allocation2] sm:$0xff] %vm511, %v599
          %608 = vst.msk [vmem:[#allocation2 + $0x8] sm:$0xff] %vm511, %v600
          %609 = vst.msk [vmem:[#allocation2 + $0x10] sm:$0xff] %vm511, %v601
          %610 = vst.msk [vmem:[#allocation2 + $0x18] sm:$0xff] %vm511, %v602
          %611 = vst.msk [vmem:[#allocation2 + $0x20] sm:$0xff] %vm511, %v603
          %612 = vst.msk [vmem:[#allocation2 + $0x28] sm:$0xff] %vm511, %v604
          %613 = vst.msk [vmem:[#allocation2 + $0x30] sm:$0xff] %vm511, %v605
          %614 = vst.msk [vmem:[#allocation2 + $0x38] sm:$0xff] %vm511, %v606
          %vm615 = vcmask 7168
          %616 = vst.msk [vmem:[#allocation3] sm:$0xff] %vm615, -inf
          %617 = vst.msk [vmem:[#allocation3 + $0x8] sm:$0xff] %vm615, -inf
          %618 = vst.msk [vmem:[#allocation3 + $0x10] sm:$0xff] %vm615, -inf
          %619 = vst.msk [vmem:[#allocation3 + $0x18] sm:$0xff] %vm615, -inf
          %620 = vst.msk [vmem:[#allocation3 + $0x20] sm:$0xff] %vm615, -inf
          %621 = vst.msk [vmem:[#allocation3 + $0x28] sm:$0xff] %vm615, -inf
          %622 = vst.msk [vmem:[#allocation3 + $0x30] sm:$0xff] %vm615, -inf
          %623 = vst.msk [vmem:[#allocation3 + $0x38] sm:$0xff] %vm615, -inf
          %624 = vst.msk [vmem:[#allocation3 + $0x40] sm:$0xff] %vm615, -inf
          %625 = vst.msk [vmem:[#allocation3 + $0x48] sm:$0xff] %vm615, -inf
          %626 = vst.msk [vmem:[#allocation3 + $0x50] sm:$0xff] %vm615, -inf
          %627 = vst.msk [vmem:[#allocation3 + $0x58] sm:$0xff] %vm615, -inf
          %628 = vst.msk [vmem:[#allocation3 + $0x60] sm:$0xff] %vm615, -inf
          %629 = vst.msk [vmem:[#allocation3 + $0x68] sm:$0xff] %vm615, -inf
          %630 = vst.msk [vmem:[#allocation3 + $0x70] sm:$0xff] %vm615, -inf
          %631 = vst.msk [vmem:[#allocation3 + $0x78] sm:$0xff] %vm615, -inf
          %632 = vst.msk [vmem:[#allocation4] sm:$0xff] %vm615, 0.0
          %633 = vst.msk [vmem:[#allocation4 + $0x8] sm:$0xff] %vm615, 0.0
          %634 = vst.msk [vmem:[#allocation4 + $0x10] sm:$0xff] %vm615, 0.0
          %635 = vst.msk [vmem:[#allocation4 + $0x18] sm:$0xff] %vm615, 0.0
          %636 = vst.msk [vmem:[#allocation4 + $0x20] sm:$0xff] %vm615, 0.0
          %637 = vst.msk [vmem:[#allocation4 + $0x28] sm:$0xff] %vm615, 0.0
          %638 = vst.msk [vmem:[#allocation4 + $0x30] sm:$0xff] %vm615, 0.0
          %639 = vst.msk [vmem:[#allocation4 + $0x38] sm:$0xff] %vm615, 0.0
          %640 = vst.msk [vmem:[#allocation4 + $0x40] sm:$0xff] %vm615, 0.0
          %641 = vst.msk [vmem:[#allocation4 + $0x48] sm:$0xff] %vm615, 0.0
          %642 = vst.msk [vmem:[#allocation4 + $0x50] sm:$0xff] %vm615, 0.0
          %643 = vst.msk [vmem:[#allocation4 + $0x58] sm:$0xff] %vm615, 0.0
          %644 = vst.msk [vmem:[#allocation4 + $0x60] sm:$0xff] %vm615, 0.0
          %645 = vst.msk [vmem:[#allocation4 + $0x68] sm:$0xff] %vm615, 0.0
          %646 = vst.msk [vmem:[#allocation4 + $0x70] sm:$0xff] %vm615, 0.0
          %647 = vst.msk [vmem:[#allocation4 + $0x78] sm:$0xff] %vm615, 0.0
          %648 = vst.msk [vmem:[#allocation5] sm:$0xff] %vm511, 0.0
          %649 = vst.msk [vmem:[#allocation5 + $0x8] sm:$0xff] %vm511, 0.0
          %650 = vst.msk [vmem:[#allocation5 + $0x10] sm:$0xff] %vm511, 0.0
          %651 = vst.msk [vmem:[#allocation5 + $0x18] sm:$0xff] %vm511, 0.0
          %652 = vst.msk [vmem:[#allocation5 + $0x20] sm:$0xff] %vm511, 0.0
          %653 = vst.msk [vmem:[#allocation5 + $0x28] sm:$0xff] %vm511, 0.0
          %654 = vst.msk [vmem:[#allocation5 + $0x30] sm:$0xff] %vm511, 0.0
          %655 = vst.msk [vmem:[#allocation5 + $0x38] sm:$0xff] %vm511, 0.0
          %656 = vst.msk [vmem:[#allocation5 + $0x40] sm:$0xff] %vm511, 0.0
          %657 = vst.msk [vmem:[#allocation5 + $0x48] sm:$0xff] %vm511, 0.0
          %658 = vst.msk [vmem:[#allocation5 + $0x50] sm:$0xff] %vm511, 0.0
          %659 = vst.msk [vmem:[#allocation5 + $0x58] sm:$0xff] %vm511, 0.0
          %660 = vst.msk [vmem:[#allocation5 + $0x60] sm:$0xff] %vm511, 0.0
          %661 = vst.msk [vmem:[#allocation5 + $0x68] sm:$0xff] %vm511, 0.0
          %662 = vst.msk [vmem:[#allocation5 + $0x70] sm:$0xff] %vm511, 0.0
          %663 = vst.msk [vmem:[#allocation5 + $0x78] sm:$0xff] %vm511, 0.0
        $region64: #{tpu_custom_call.1} parent=51 // pred_fallthru
          _
        %v664 = vld [vmem:[%s381] sm:$0xff]
        %v665 = vld [vmem:[%s381 + $0x8] sm:$0xff]
        %v666 = vld [vmem:[%s381 + $0x10] sm:$0xff]
        %v667 = vld [vmem:[%s381 + $0x18] sm:$0xff]
        %v668 = vld [vmem:[%s446] sm:$0x1]
        %v670 = vlaneseq
        %v671 = vshrl.u32 %v670, 7
        %v672 = vsub.s32 0, %v671
        %v673 = vrot.slane %v668, %v672
        %v675 = vmul.f32 %v664, %v673
        %v676 = vmul.f32 %v665, %v673
        %v677 = vmul.f32 %v666, %v673
        %v678 = vmul.f32 %v667, %v673
        %v679 = vpack.c.bf16 %v676, %v675
        %v680 = vpack.c.bf16 %v678, %v677
        %v681 = vld [vmem:[#allocation2] sm:$0xff]
        %v682 = vld [vmem:[#allocation2 + $0x8] sm:$0xff]
        %v683 = vld [vmem:[#allocation2 + $0x10] sm:$0xff]
        %v684 = vld [vmem:[#allocation2 + $0x18] sm:$0xff]
        %v685 = vld [vmem:[#allocation2 + $0x20] sm:$0xff]
        %v686 = vld [vmem:[#allocation2 + $0x28] sm:$0xff]
        %v687 = vld [vmem:[#allocation2 + $0x30] sm:$0xff]
        %v688 = vld [vmem:[#allocation2 + $0x38] sm:$0xff]
        %vm689 = vcmask 261120
        %v691 = vsel %vm689, %v681, 0
        %v694 = vsel %vm689, %v682, 0
        %v697 = vsel %vm689, %v683, 0
        %v700 = vsel %vm689, %v684, 0
        %v703 = vsel %vm689, %v685, 0
        %v706 = vsel %vm689, %v686, 0
        %v709 = vsel %vm689, %v687, 0
        %v712 = vsel %vm689, %v688, 0
        %714 = vmatprep.subr.bf16.mxu0 0
        %715 = vmatpush1.bf16.msra.mxu0 %v679
        %716 = vmatprep.subr.bf16.mxu0 0
        %717 = vmatpush1.bf16.msra.mxu0 %v680
        %718 = vmatprep.subr.bf16.mxu0 0
        %719 = vmatpush1.bf16.msra.mxu0 0
        %720 = vmatprep.subr.bf16.mxu0 0
        %721 = vmatpush1.bf16.msra.mxu0 0
        %722 = vmatprep.subr.bf16.mxu0 0
        %723 = vmatpush1.bf16.msra.mxu0 0
        %724 = vmatprep.subr.bf16.mxu0 0
        %725 = vmatpush1.bf16.msra.mxu0 0
        %726 = vmatprep.subr.bf16.mxu0 0
        %727 = vmatpush1.bf16.msra.mxu0 0
        %728 = vmatprep.subr.bf16.mxu0 0
        %729 = vmatpush1.bf16.msra.mxu0 0
        %730 = vmatprep.subr.bf16.mxu0 0
        %731 = vmatpush1.bf16.msra.mxu0 0
        %732 = vmatprep.subr.bf16.mxu0 0
        %733 = vmatpush1.bf16.msra.mxu0 0
        %734 = vmatprep.subr.bf16.mxu0 0
        %735 = vmatpush1.bf16.msra.mxu0 0
        %736 = vmatprep.subr.bf16.mxu0 0
        %737 = vmatpush1.bf16.msra.mxu0 0
        %738 = vmatprep.subr.bf16.mxu0 0
        %739 = vmatpush1.bf16.msra.mxu0 0
        %740 = vmatprep.subr.bf16.mxu0 0
        %741 = vmatpush1.bf16.msra.mxu0 0
        %742 = vmatprep.subr.bf16.mxu0 0
        %743 = vmatpush1.bf16.msra.mxu0 0
        %744 = vmatprep.subr.bf16.mxu0 0
        %745 = vmatpush1.bf16.msra.mxu0 0
        %746 = vmatprep.mubr.bf16.mxu0 0
        %747 = vmatmul.mubr.bf16.gmra.mrb[0].mxu0 %v691
        %v748 = vpop.f32.mrb[0].mxu0
        %v749 = vadd.f32 0.0, %v748
        %v750 = vpop.f32.mrb[0].mxu0
        %v751 = vpop.f32.mrb[0].mxu0
        %v752 = vadd.f32 0.0, %v751
        %v753 = vpop.f32.mrb[0].mxu0
        %754 = vmatprep.mubr.bf16.mxu0 0
        %755 = vmatmul.mubr.bf16.gmra.mrb[0].mxu0 %v694
        %v756 = vpop.f32.mrb[0].mxu0
        %v757 = vadd.f32 0.0, %v756
        %v758 = vpop.f32.mrb[0].mxu0
        %v759 = vpop.f32.mrb[0].mxu0
        %v760 = vadd.f32 0.0, %v759
        %v761 = vpop.f32.mrb[0].mxu0
        %762 = vmatprep.mubr.bf16.mxu0 0
        %763 = vmatmul.mubr.bf16.gmra.mrb[0].mxu0 %v697
        %v764 = vpop.f32.mrb[0].mxu0
        %v765 = vadd.f32 0.0, %v764
        %v766 = vpop.f32.mrb[0].mxu0
        %v767 = vpop.f32.mrb[0].mxu0
        %v768 = vadd.f32 0.0, %v767
        %v769 = vpop.f32.mrb[0].mxu0
        %770 = vmatprep.mubr.bf16.mxu0 0
        %771 = vmatmul.mubr.bf16.gmra.mrb[0].mxu0 %v700
        %v772 = vpop.f32.mrb[0].mxu0
        %v773 = vadd.f32 0.0, %v772
        %v774 = vpop.f32.mrb[0].mxu0
        %v775 = vpop.f32.mrb[0].mxu0
        %v776 = vadd.f32 0.0, %v775
        %v777 = vpop.f32.mrb[0].mxu0
        %778 = vmatprep.mubr.bf16.mxu0 0
        %779 = vmatmul.mubr.bf16.gmra.mrb[0].mxu0 %v703
        %v780 = vpop.f32.mrb[0].mxu0
        %v781 = vadd.f32 0.0, %v780
        %v782 = vpop.f32.mrb[0].mxu0
        %v783 = vpop.f32.mrb[0].mxu0
        %v784 = vadd.f32 0.0, %v783
        %v785 = vpop.f32.mrb[0].mxu0
        %786 = vmatprep.mubr.bf16.mxu0 0
        %787 = vmatmul.mubr.bf16.gmra.mrb[0].mxu0 %v706
        %v788 = vpop.f32.mrb[0].mxu0
        %v789 = vadd.f32 0.0, %v788
        %v790 = vpop.f32.mrb[0].mxu0
        %v791 = vpop.f32.mrb[0].mxu0
        %v792 = vadd.f32 0.0, %v791
        %v793 = vpop.f32.mrb[0].mxu0
        %794 = vmatprep.mubr.bf16.mxu0 0
        %795 = vmatmul.mubr.bf16.gmra.mrb[0].mxu0 %v709
        %v796 = vpop.f32.mrb[0].mxu0
        %v797 = vadd.f32 0.0, %v796
        %v798 = vpop.f32.mrb[0].mxu0
        %v799 = vpop.f32.mrb[0].mxu0
        %v800 = vadd.f32 0.0, %v799
        %v801 = vpop.f32.mrb[0].mxu0
        %802 = vmatprep.mubr.bf16.mxu0 0
        %803 = vmatmul.mubr.bf16.gmra.mrb[0].mxu0 %v712
        %v804 = vpop.f32.mrb[0].mxu0
        %v805 = vadd.f32 0.0, %v804
        %v806 = vpop.f32.mrb[0].mxu0
        %v807 = vpop.f32.mrb[0].mxu0
        %v808 = vadd.f32 0.0, %v807
        %v809 = vpop.f32.mrb[0].mxu0
        %810 = vdwg.mxu0
        %v811 = vld [vmem:[#allocation3] sm:$0xff]
        %v812 = vld [vmem:[#allocation3 + $0x8] sm:$0xff]
        %v813 = vld [vmem:[#allocation3 + $0x10] sm:$0xff]
        %v814 = vld [vmem:[#allocation3 + $0x18] sm:$0xff]
        %v815 = vld [vmem:[#allocation3 + $0x20] sm:$0xff]
        %v816 = vld [vmem:[#allocation3 + $0x28] sm:$0xff]
        %v817 = vld [vmem:[#allocation3 + $0x30] sm:$0xff]
        %v818 = vld [vmem:[#allocation3 + $0x38] sm:$0xff]
        %v819 = vld [vmem:[#allocation3 + $0x40] sm:$0xff]
        %v820 = vld [vmem:[#allocation3 + $0x48] sm:$0xff]
        %v821 = vld [vmem:[#allocation3 + $0x50] sm:$0xff]
        %v822 = vld [vmem:[#allocation3 + $0x58] sm:$0xff]
        %v823 = vld [vmem:[#allocation3 + $0x60] sm:$0xff]
        %v824 = vld [vmem:[#allocation3 + $0x68] sm:$0xff]
        %v825 = vld [vmem:[#allocation3 + $0x70] sm:$0xff]
        %v826 = vld [vmem:[#allocation3 + $0x78] sm:$0xff]
        %827 = vmax.xlane.f32.xlu0 %v749
        %v828 = vpop.xlane.xlu0 %827
        %829 = vmax.xlane.f32.xlu0 %v752
        %v830 = vpop.xlane.xlu0 %829
        %831 = vmax.xlane.f32.xlu0 %v757
        %v832 = vpop.xlane.xlu0 %831
        %833 = vmax.xlane.f32.xlu0 %v760
        %v834 = vpop.xlane.xlu0 %833
        %835 = vmax.xlane.f32.xlu0 %v765
        %v836 = vpop.xlane.xlu0 %835
        %837 = vmax.xlane.f32.xlu0 %v768
        %v838 = vpop.xlane.xlu0 %837
        %839 = vmax.xlane.f32.xlu0 %v773
        %v840 = vpop.xlane.xlu0 %839
        %841 = vmax.xlane.f32.xlu0 %v776
        %v842 = vpop.xlane.xlu0 %841
        %843 = vmax.xlane.f32.xlu0 %v781
        %v844 = vpop.xlane.xlu0 %843
        %845 = vmax.xlane.f32.xlu0 %v784
        %v846 = vpop.xlane.xlu0 %845
        %847 = vmax.xlane.f32.xlu0 %v789
        %v848 = vpop.xlane.xlu0 %847
        %849 = vmax.xlane.f32.xlu0 %v792
        %v850 = vpop.xlane.xlu0 %849
        %851 = vmax.xlane.f32.xlu0 %v797
        %v852 = vpop.xlane.xlu0 %851
        %853 = vmax.xlane.f32.xlu0 %v800
        %v854 = vpop.xlane.xlu0 %853
        %855 = vmax.xlane.f32.xlu0 %v805
        %v856 = vpop.xlane.xlu0 %855
        %857 = vmax.xlane.f32.xlu0 %v808
        %v858 = vpop.xlane.xlu0 %857
        %v859 = vmax.f32 %v811, %v828
        %v860 = vmax.f32 %v812, %v830
        %v861 = vmax.f32 %v813, %v832
        %v862 = vmax.f32 %v814, %v834
        %v863 = vmax.f32 %v815, %v836
        %v864 = vmax.f32 %v816, %v838
        %v865 = vmax.f32 %v817, %v840
        %v866 = vmax.f32 %v818, %v842
        %v867 = vmax.f32 %v819, %v844
        %v868 = vmax.f32 %v820, %v846
        %v869 = vmax.f32 %v821, %v848
        %v870 = vmax.f32 %v822, %v850
        %v871 = vmax.f32 %v823, %v852
        %v872 = vmax.f32 %v824, %v854
        %v873 = vmax.f32 %v825, %v856
        %v874 = vmax.f32 %v826, %v858
        %v875 = vsub.f32 %v811, %v859
        %v876 = vsub.f32 %v812, %v860
        %v877 = vsub.f32 %v813, %v861
        %v878 = vsub.f32 %v814, %v862
        %v879 = vsub.f32 %v815, %v863
        %v880 = vsub.f32 %v816, %v864
        %v881 = vsub.f32 %v817, %v865
        %v882 = vsub.f32 %v818, %v866
        %v883 = vsub.f32 %v819, %v867
        %v884 = vsub.f32 %v820, %v868
        %v885 = vsub.f32 %v821, %v869
        %v886 = vsub.f32 %v822, %v870
        %v887 = vsub.f32 %v823, %v871
        %v888 = vsub.f32 %v824, %v872
        %v889 = vsub.f32 %v825, %v873
        %v890 = vsub.f32 %v826, %v874
        %v891 = vmul.f32 %v875, 1.442695
        %v892 = vpow.pop %v891
        %v893 = vmul.f32 %v876, 1.442695
        %v894 = vpow.pop %v893
        %v895 = vmul.f32 %v877, 1.442695
        %v896 = vpow.pop %v895
        %v897 = vmul.f32 %v878, 1.442695
        %v898 = vpow.pop %v897
        %v899 = vmul.f32 %v879, 1.442695
        %v900 = vpow.pop %v899
        %v901 = vmul.f32 %v880, 1.442695
        %v902 = vpow.pop %v901
        %v903 = vmul.f32 %v881, 1.442695
        %v904 = vpow.pop %v903
        %v905 = vmul.f32 %v882, 1.442695
        %v906 = vpow.pop %v905
        %v907 = vmul.f32 %v883, 1.442695
        %v908 = vpow.pop %v907
        %v909 = vmul.f32 %v884, 1.442695
        %v910 = vpow.pop %v909
        %v911 = vmul.f32 %v885, 1.442695
        %v912 = vpow.pop %v911
        %v913 = vmul.f32 %v886, 1.442695
        %v914 = vpow.pop %v913
        %v915 = vmul.f32 %v887, 1.442695
        %v916 = vpow.pop %v915
        %v917 = vmul.f32 %v888, 1.442695
        %v918 = vpow.pop %v917
        %v919 = vmul.f32 %v889, 1.442695
        %v920 = vpow.pop %v919
        %v921 = vmul.f32 %v890, 1.442695
        %v922 = vpow.pop %v921
        %924 = vset.pattern.permute.xlu0 0
        %925 = vperm.xlu0 %924, %v859
        %v926 = vpop.permute.xlu0 %925
        %929 = vset.pattern.permute.xlu0 0
        %930 = vperm.xlu0 %929, %v860
        %v931 = vpop.permute.xlu0 %930
        %934 = vset.pattern.permute.xlu0 0
        %935 = vperm.xlu0 %934, %v861
        %v936 = vpop.permute.xlu0 %935
        %939 = vset.pattern.permute.xlu0 0
        %940 = vperm.xlu0 %939, %v862
        %v941 = vpop.permute.xlu0 %940
        %944 = vset.pattern.permute.xlu0 0
        %945 = vperm.xlu0 %944, %v863
        %v946 = vpop.permute.xlu0 %945
        %949 = vset.pattern.permute.xlu0 0
        %950 = vperm.xlu0 %949, %v864
        %v951 = vpop.permute.xlu0 %950
        %954 = vset.pattern.permute.xlu0 0
        %955 = vperm.xlu0 %954, %v865
        %v956 = vpop.permute.xlu0 %955
        %959 = vset.pattern.permute.xlu0 0
        %960 = vperm.xlu0 %959, %v866
        %v961 = vpop.permute.xlu0 %960
        %964 = vset.pattern.permute.xlu0 0
        %965 = vperm.xlu0 %964, %v867
        %v966 = vpop.permute.xlu0 %965
        %969 = vset.pattern.permute.xlu0 0
        %970 = vperm.xlu0 %969, %v868
        %v971 = vpop.permute.xlu0 %970
        %974 = vset.pattern.permute.xlu0 0
        %975 = vperm.xlu0 %974, %v869
        %v976 = vpop.permute.xlu0 %975
        %979 = vset.pattern.permute.xlu0 0
        %980 = vperm.xlu0 %979, %v870
        %v981 = vpop.permute.xlu0 %980
        %984 = vset.pattern.permute.xlu0 0
        %985 = vperm.xlu0 %984, %v871
        %v986 = vpop.permute.xlu0 %985
        %989 = vset.pattern.permute.xlu0 0
        %990 = vperm.xlu0 %989, %v872
        %v991 = vpop.permute.xlu0 %990
        %994 = vset.pattern.permute.xlu0 0
        %995 = vperm.xlu0 %994, %v873
        %v996 = vpop.permute.xlu0 %995
        %999 = vset.pattern.permute.xlu0 0
        %1000 = vperm.xlu0 %999, %v874
        %v1001 = vpop.permute.xlu0 %1000
        %v1003 = vsub.f32 %v749, %v926
        %v1004 = vsub.f32 %v752, %v931
        %v1005 = vsub.f32 %v757, %v936
        %v1006 = vsub.f32 %v760, %v941
        %v1007 = vsub.f32 %v765, %v946
        %v1008 = vsub.f32 %v768, %v951
        %v1009 = vsub.f32 %v773, %v956
        %v1010 = vsub.f32 %v776, %v961
        %v1011 = vsub.f32 %v781, %v966
        %v1012 = vsub.f32 %v784, %v971
        %v1013 = vsub.f32 %v789, %v976
        %v1014 = vsub.f32 %v792, %v981
        %v1015 = vsub.f32 %v797, %v986
        %v1016 = vsub.f32 %v800, %v991
        %v1017 = vsub.f32 %v805, %v996
        %v1018 = vsub.f32 %v808, %v1001
        %v1019 = vmul.f32 %v1003, 1.442695
        %v1020 = vpow.pop %v1019
        %v1021 = vmul.f32 %v1004, 1.442695
        %v1022 = vpow.pop %v1021
        %v1023 = vmul.f32 %v1005, 1.442695
        %v1024 = vpow.pop %v1023
        %v1025 = vmul.f32 %v1006, 1.442695
        %v1026 = vpow.pop %v1025
        %v1027 = vmul.f32 %v1007, 1.442695
        %v1028 = vpow.pop %v1027
        %v1029 = vmul.f32 %v1008, 1.442695
        %v1030 = vpow.pop %v1029
        %v1031 = vmul.f32 %v1009, 1.442695
        %v1032 = vpow.pop %v1031
        %v1033 = vmul.f32 %v1010, 1.442695
        %v1034 = vpow.pop %v1033
        %v1035 = vmul.f32 %v1011, 1.442695
        %v1036 = vpow.pop %v1035
        %v1037 = vmul.f32 %v1012, 1.442695
        %v1038 = vpow.pop %v1037
        %v1039 = vmul.f32 %v1013, 1.442695
        %v1040 = vpow.pop %v1039
        %v1041 = vmul.f32 %v1014, 1.442695
        %v1042 = vpow.pop %v1041
        %v1043 = vmul.f32 %v1015, 1.442695
        %v1044 = vpow.pop %v1043
        %v1045 = vmul.f32 %v1016, 1.442695
        %v1046 = vpow.pop %v1045
        %v1047 = vmul.f32 %v1017, 1.442695
        %v1048 = vpow.pop %v1047
        %v1049 = vmul.f32 %v1018, 1.442695
        %v1050 = vpow.pop %v1049
        %vm1051 = vcmask 7168
        %1052 = vst.msk [vmem:[#allocation3] sm:$0xff] %vm1051, %v859
        %1053 = vst.msk [vmem:[#allocation3 + $0x8] sm:$0xff] %vm1051, %v860
        %1054 = vst.msk [vmem:[#allocation3 + $0x10] sm:$0xff] %vm1051, %v861
        %1055 = vst.msk [vmem:[#allocation3 + $0x18] sm:$0xff] %vm1051, %v862
        %1056 = vst.msk [vmem:[#allocation3 + $0x20] sm:$0xff] %vm1051, %v863
        %1057 = vst.msk [vmem:[#allocation3 + $0x28] sm:$0xff] %vm1051, %v864
        %1058 = vst.msk [vmem:[#allocation3 + $0x30] sm:$0xff] %vm1051, %v865
        %1059 = vst.msk [vmem:[#allocation3 + $0x38] sm:$0xff] %vm1051, %v866
        %1060 = vst.msk [vmem:[#allocation3 + $0x40] sm:$0xff] %vm1051, %v867
        %1061 = vst.msk [vmem:[#allocation3 + $0x48] sm:$0xff] %vm1051, %v868
        %1062 = vst.msk [vmem:[#allocation3 + $0x50] sm:$0xff] %vm1051, %v869
        %1063 = vst.msk [vmem:[#allocation3 + $0x58] sm:$0xff] %vm1051, %v870
        %1064 = vst.msk [vmem:[#allocation3 + $0x60] sm:$0xff] %vm1051, %v871
        %1065 = vst.msk [vmem:[#allocation3 + $0x68] sm:$0xff] %vm1051, %v872
        %1066 = vst.msk [vmem:[#allocation3 + $0x70] sm:$0xff] %vm1051, %v873
        %1067 = vst.msk [vmem:[#allocation3 + $0x78] sm:$0xff] %vm1051, %v874
        %v1068 = vld [vmem:[#allocation4] sm:$0xff]
        %v1069 = vld [vmem:[#allocation4 + $0x8] sm:$0xff]
        %v1070 = vld [vmem:[#allocation4 + $0x10] sm:$0xff]
        %v1071 = vld [vmem:[#allocation4 + $0x18] sm:$0xff]
        %v1072 = vld [vmem:[#allocation4 + $0x20] sm:$0xff]
        %v1073 = vld [vmem:[#allocation4 + $0x28] sm:$0xff]
        %v1074 = vld [vmem:[#allocation4 + $0x30] sm:$0xff]
        %v1075 = vld [vmem:[#allocation4 + $0x38] sm:$0xff]
        %v1076 = vld [vmem:[#allocation4 + $0x40] sm:$0xff]
        %v1077 = vld [vmem:[#allocation4 + $0x48] sm:$0xff]
        %v1078 = vld [vmem:[#allocation4 + $0x50] sm:$0xff]
        %v1079 = vld [vmem:[#allocation4 + $0x58] sm:$0xff]
        %v1080 = vld [vmem:[#allocation4 + $0x60] sm:$0xff]
        %v1081 = vld [vmem:[#allocation4 + $0x68] sm:$0xff]
        %v1082 = vld [vmem:[#allocation4 + $0x70] sm:$0xff]
        %v1083 = vld [vmem:[#allocation4 + $0x78] sm:$0xff]
        %v1084 = vmul.f32 %v892, %v1068
        %v1085 = vmul.f32 %v894, %v1069
        %v1086 = vmul.f32 %v896, %v1070
        %v1087 = vmul.f32 %v898, %v1071
        %v1088 = vmul.f32 %v900, %v1072
        %v1089 = vmul.f32 %v902, %v1073
        %v1090 = vmul.f32 %v904, %v1074
        %v1091 = vmul.f32 %v906, %v1075
        %v1092 = vmul.f32 %v908, %v1076
        %v1093 = vmul.f32 %v910, %v1077
        %v1094 = vmul.f32 %v912, %v1078
        %v1095 = vmul.f32 %v914, %v1079
        %v1096 = vmul.f32 %v916, %v1080
        %v1097 = vmul.f32 %v918, %v1081
        %v1098 = vmul.f32 %v920, %v1082
        %v1099 = vmul.f32 %v922, %v1083
        %1100 = vadd.xlane.f32.xlu0 %v1020
        %v1101 = vpop.xlane.xlu0 %1100
        %1102 = vadd.xlane.f32.xlu0 %v1022
        %v1103 = vpop.xlane.xlu0 %1102
        %1104 = vadd.xlane.f32.xlu0 %v1024
        %v1105 = vpop.xlane.xlu0 %1104
        %1106 = vadd.xlane.f32.xlu0 %v1026
        %v1107 = vpop.xlane.xlu0 %1106
        %1108 = vadd.xlane.f32.xlu0 %v1028
        %v1109 = vpop.xlane.xlu0 %1108
        %1110 = vadd.xlane.f32.xlu0 %v1030
        %v1111 = vpop.xlane.xlu0 %1110
        %1112 = vadd.xlane.f32.xlu0 %v1032
        %v1113 = vpop.xlane.xlu0 %1112
        %1114 = vadd.xlane.f32.xlu0 %v1034
        %v1115 = vpop.xlane.xlu0 %1114
        %1116 = vadd.xlane.f32.xlu0 %v1036
        %v1117 = vpop.xlane.xlu0 %1116
        %1118 = vadd.xlane.f32.xlu0 %v1038
        %v1119 = vpop.xlane.xlu0 %1118
        %1120 = vadd.xlane.f32.xlu0 %v1040
        %v1121 = vpop.xlane.xlu0 %1120
        %1122 = vadd.xlane.f32.xlu0 %v1042
        %v1123 = vpop.xlane.xlu0 %1122
        %1124 = vadd.xlane.f32.xlu0 %v1044
        %v1125 = vpop.xlane.xlu0 %1124
        %1126 = vadd.xlane.f32.xlu0 %v1046
        %v1127 = vpop.xlane.xlu0 %1126
        %1128 = vadd.xlane.f32.xlu0 %v1048
        %v1129 = vpop.xlane.xlu0 %1128
        %1130 = vadd.xlane.f32.xlu0 %v1050
        %v1131 = vpop.xlane.xlu0 %1130
        %v1132 = vadd.f32 %v1084, %v1101
        %v1133 = vadd.f32 %v1085, %v1103
        %v1134 = vadd.f32 %v1086, %v1105
        %v1135 = vadd.f32 %v1087, %v1107
        %v1136 = vadd.f32 %v1088, %v1109
        %v1137 = vadd.f32 %v1089, %v1111
        %v1138 = vadd.f32 %v1090, %v1113
        %v1139 = vadd.f32 %v1091, %v1115
        %v1140 = vadd.f32 %v1092, %v1117
        %v1141 = vadd.f32 %v1093, %v1119
        %v1142 = vadd.f32 %v1094, %v1121
        %v1143 = vadd.f32 %v1095, %v1123
        %v1144 = vadd.f32 %v1096, %v1125
        %v1145 = vadd.f32 %v1097, %v1127
        %v1146 = vadd.f32 %v1098, %v1129
        %v1147 = vadd.f32 %v1099, %v1131
        %1148 = vst.msk [vmem:[#allocation4] sm:$0xff] %vm1051, %v1132
        %1149 = vst.msk [vmem:[#allocation4 + $0x8] sm:$0xff] %vm1051, %v1133
        %1150 = vst.msk [vmem:[#allocation4 + $0x10] sm:$0xff] %vm1051, %v1134
        %1151 = vst.msk [vmem:[#allocation4 + $0x18] sm:$0xff] %vm1051, %v1135
        %1152 = vst.msk [vmem:[#allocation4 + $0x20] sm:$0xff] %vm1051, %v1136
        %1153 = vst.msk [vmem:[#allocation4 + $0x28] sm:$0xff] %vm1051, %v1137
        %1154 = vst.msk [vmem:[#allocation4 + $0x30] sm:$0xff] %vm1051, %v1138
        %1155 = vst.msk [vmem:[#allocation4 + $0x38] sm:$0xff] %vm1051, %v1139
        %1156 = vst.msk [vmem:[#allocation4 + $0x40] sm:$0xff] %vm1051, %v1140
        %1157 = vst.msk [vmem:[#allocation4 + $0x48] sm:$0xff] %vm1051, %v1141
        %1158 = vst.msk [vmem:[#allocation4 + $0x50] sm:$0xff] %vm1051, %v1142
        %1159 = vst.msk [vmem:[#allocation4 + $0x58] sm:$0xff] %vm1051, %v1143
        %1160 = vst.msk [vmem:[#allocation4 + $0x60] sm:$0xff] %vm1051, %v1144
        %1161 = vst.msk [vmem:[#allocation4 + $0x68] sm:$0xff] %vm1051, %v1145
        %1162 = vst.msk [vmem:[#allocation4 + $0x70] sm:$0xff] %vm1051, %v1146
        %1163 = vst.msk [vmem:[#allocation4 + $0x78] sm:$0xff] %vm1051, %v1147
        %v1164 = vld [vmem:[%s6] sm:$0xf]
        %v1165 = vld [vmem:[%s6 + $0x4] sm:$0xf]
        %v1166 = vld [vmem:[%s6 + $0x8] sm:$0xf]
        %v1167 = vld [vmem:[%s6 + $0xc] sm:$0xf]
        %v1172 = vunpack.c.l.b16 %v1164
        %v1173 = vunpack.c.l.b16 %v1165
        %v1174 = vunpack.c.l.b16 %v1166
        %v1175 = vunpack.c.l.b16 %v1167
        %v1176 = vpack.c.b16 %v1173, %v1172
        %v1177 = vpack.c.b16 %v1175, %v1174
        %v1179 = vsel %vm689, %v1176, 0
        %v1182 = vsel %vm689, %v1177, 0
        %1184 = vmatprep.subr.bf16.mxu0 0
        %1185 = vmatpush1.bf16.msra.mxu0 %v679
        %1186 = vmatprep.subr.bf16.mxu0 0
        %1187 = vmatpush1.bf16.msra.mxu0 %v680
        %1188 = vmatprep.subr.bf16.mxu0 0
        %1189 = vmatpush1.bf16.msra.mxu0 0
        %1190 = vmatprep.subr.bf16.mxu0 0
        %1191 = vmatpush1.bf16.msra.mxu0 0
        %1192 = vmatprep.subr.bf16.mxu0 0
        %1193 = vmatpush1.bf16.msra.mxu0 0
        %1194 = vmatprep.subr.bf16.mxu0 0
        %1195 = vmatpush1.bf16.msra.mxu0 0
        %1196 = vmatprep.subr.bf16.mxu0 0
        %1197 = vmatpush1.bf16.msra.mxu0 0
        %1198 = vmatprep.subr.bf16.mxu0 0
        %1199 = vmatpush1.bf16.msra.mxu0 0
        %1200 = vmatprep.subr.bf16.mxu0 0
        %1201 = vmatpush1.bf16.msra.mxu0 0
        %1202 = vmatprep.subr.bf16.mxu0 0
        %1203 = vmatpush1.bf16.msra.mxu0 0
        %1204 = vmatprep.subr.bf16.mxu0 0
        %1205 = vmatpush1.bf16.msra.mxu0 0
        %1206 = vmatprep.subr.bf16.mxu0 0
        %1207 = vmatpush1.bf16.msra.mxu0 0
        %1208 = vmatprep.subr.bf16.mxu0 0
        %1209 = vmatpush1.bf16.msra.mxu0 0
        %1210 = vmatprep.subr.bf16.mxu0 0
        %1211 = vmatpush1.bf16.msra.mxu0 0
        %1212 = vmatprep.subr.bf16.mxu0 0
        %1213 = vmatpush1.bf16.msra.mxu0 0
        %1214 = vmatprep.subr.bf16.mxu0 0
        %1215 = vmatpush1.bf16.msra.mxu0 0
        %1216 = vmatprep.mubr.bf16.mxu0 0
        %1217 = vmatmul.mubr.bf16.gmra.mrb[0].mxu0 %v1179
        %v1218 = vpop.f32.mrb[0].mxu0
        %v1219 = vadd.f32 0.0, %v1218
        %v1220 = vpop.f32.mrb[0].mxu0
        %v1221 = vpop.f32.mrb[0].mxu0
        %v1222 = vadd.f32 0.0, %v1221
        %v1223 = vpop.f32.mrb[0].mxu0
        %1224 = vmatprep.mubr.bf16.mxu0 0
        %1225 = vmatmul.mubr.bf16.gmra.mrb[0].mxu0 %v1182
        %v1226 = vpop.f32.mrb[0].mxu0
        %v1227 = vadd.f32 0.0, %v1226
        %v1228 = vpop.f32.mrb[0].mxu0
        %v1229 = vpop.f32.mrb[0].mxu0
        %v1230 = vadd.f32 0.0, %v1229
        %v1231 = vpop.f32.mrb[0].mxu0
        %1232 = vdwg.mxu0
        %v1233 = vpack.c.bf16 %v1222, %v1219
        %v1234 = vpack.c.bf16 %v1230, %v1227
        %v1235 = vld [vmem:[#allocation5] sm:$0xff]
        %v1236 = vld [vmem:[#allocation5 + $0x8] sm:$0xff]
        %v1237 = vld [vmem:[#allocation5 + $0x10] sm:$0xff]
        %v1238 = vld [vmem:[#allocation5 + $0x18] sm:$0xff]
        %v1239 = vld [vmem:[#allocation5 + $0x20] sm:$0xff]
        %v1240 = vld [vmem:[#allocation5 + $0x28] sm:$0xff]
        %v1241 = vld [vmem:[#allocation5 + $0x30] sm:$0xff]
        %v1242 = vld [vmem:[#allocation5 + $0x38] sm:$0xff]
        %v1243 = vld [vmem:[#allocation5 + $0x40] sm:$0xff]
        %v1244 = vld [vmem:[#allocation5 + $0x48] sm:$0xff]
        %v1245 = vld [vmem:[#allocation5 + $0x50] sm:$0xff]
        %v1246 = vld [vmem:[#allocation5 + $0x58] sm:$0xff]
        %v1247 = vld [vmem:[#allocation5 + $0x60] sm:$0xff]
        %v1248 = vld [vmem:[#allocation5 + $0x68] sm:$0xff]
        %v1249 = vld [vmem:[#allocation5 + $0x70] sm:$0xff]
        %v1250 = vld [vmem:[#allocation5 + $0x78] sm:$0xff]
        %1252 = vset.pattern.permute.xlu0 0
        %1253 = vperm.xlu0 %1252, %v892
        %v1254 = vpop.permute.xlu0 %1253
        %1257 = vset.pattern.permute.xlu0 0
        %1258 = vperm.xlu0 %1257, %v894
        %v1259 = vpop.permute.xlu0 %1258
        %1262 = vset.pattern.permute.xlu0 0
        %1263 = vperm.xlu0 %1262, %v896
        %v1264 = vpop.permute.xlu0 %1263
        %1267 = vset.pattern.permute.xlu0 0
        %1268 = vperm.xlu0 %1267, %v898
        %v1269 = vpop.permute.xlu0 %1268
        %1272 = vset.pattern.permute.xlu0 0
        %1273 = vperm.xlu0 %1272, %v900
        %v1274 = vpop.permute.xlu0 %1273
        %1277 = vset.pattern.permute.xlu0 0
        %1278 = vperm.xlu0 %1277, %v902
        %v1279 = vpop.permute.xlu0 %1278
        %1282 = vset.pattern.permute.xlu0 0
        %1283 = vperm.xlu0 %1282, %v904
        %v1284 = vpop.permute.xlu0 %1283
        %1287 = vset.pattern.permute.xlu0 0
        %1288 = vperm.xlu0 %1287, %v906
        %v1289 = vpop.permute.xlu0 %1288
        %1292 = vset.pattern.permute.xlu0 0
        %1293 = vperm.xlu0 %1292, %v908
        %v1294 = vpop.permute.xlu0 %1293
        %1297 = vset.pattern.permute.xlu0 0
        %1298 = vperm.xlu0 %1297, %v910
        %v1299 = vpop.permute.xlu0 %1298
        %1302 = vset.pattern.permute.xlu0 0
        %1303 = vperm.xlu0 %1302, %v912
        %v1304 = vpop.permute.xlu0 %1303
        %1307 = vset.pattern.permute.xlu0 0
        %1308 = vperm.xlu0 %1307, %v914
        %v1309 = vpop.permute.xlu0 %1308
        %1312 = vset.pattern.permute.xlu0 0
        %1313 = vperm.xlu0 %1312, %v916
        %v1314 = vpop.permute.xlu0 %1313
        %1317 = vset.pattern.permute.xlu0 0
        %1318 = vperm.xlu0 %1317, %v918
        %v1319 = vpop.permute.xlu0 %1318
        %1322 = vset.pattern.permute.xlu0 0
        %1323 = vperm.xlu0 %1322, %v920
        %v1324 = vpop.permute.xlu0 %1323
        %1327 = vset.pattern.permute.xlu0 0
        %1328 = vperm.xlu0 %1327, %v922
        %v1329 = vpop.permute.xlu0 %1328
        %v1331 = vmul.f32 %v1235, %v1254
        %v1332 = vmul.f32 %v1236, %v1259
        %v1333 = vmul.f32 %v1237, %v1264
        %v1334 = vmul.f32 %v1238, %v1269
        %v1335 = vmul.f32 %v1239, %v1274
        %v1336 = vmul.f32 %v1240, %v1279
        %v1337 = vmul.f32 %v1241, %v1284
        %v1338 = vmul.f32 %v1242, %v1289
        %v1339 = vmul.f32 %v1243, %v1294
        %v1340 = vmul.f32 %v1244, %v1299
        %v1341 = vmul.f32 %v1245, %v1304
        %v1342 = vmul.f32 %v1246, %v1309
        %v1343 = vmul.f32 %v1247, %v1314
        %v1344 = vmul.f32 %v1248, %v1319
        %v1345 = vmul.f32 %v1249, %v1324
        %v1346 = vmul.f32 %v1250, %v1329
        %v1347 = vpack.c.bf16 %v1022, %v1020
        %v1348 = vpack.c.bf16 %v1026, %v1024
        %v1349 = vpack.c.bf16 %v1030, %v1028
        %v1350 = vpack.c.bf16 %v1034, %v1032
        %v1351 = vpack.c.bf16 %v1038, %v1036
        %v1352 = vpack.c.bf16 %v1042, %v1040
        %v1353 = vpack.c.bf16 %v1046, %v1044
        %v1354 = vpack.c.bf16 %v1050, %v1048
        %1355 = vmatprep.subr.bf16.mxu0 0
        %1356 = vmatpush1.bf16.xpose.msra.mxu0 %v1233
        %1357 = vmatprep.subr.bf16.mxu0 0
        %1358 = vmatpush1.bf16.xpose.msra.mxu0 %v1234
        %1359 = vmatprep.subr.bf16.mxu0 0
        %1360 = vmatpush1.bf16.xpose.msra.mxu0 0
        %1361 = vmatprep.subr.bf16.mxu0 0
        %1362 = vmatpush1.bf16.xpose.msra.mxu0 0
        %1363 = vmatprep.subr.bf16.mxu0 0
        %1364 = vmatpush1.bf16.xpose.msra.mxu0 0
        %1365 = vmatprep.subr.bf16.mxu0 0
        %1366 = vmatpush1.bf16.xpose.msra.mxu0 0
        %1367 = vmatprep.subr.bf16.mxu0 0
        %1368 = vmatpush1.bf16.xpose.msra.mxu0 0
        %1369 = vmatprep.subr.bf16.mxu0 0
        %1370 = vmatpush1.bf16.xpose.msra.mxu0 0
        %1371 = vmatprep.subr.bf16.mxu0 0
        %1372 = vmatpush1.bf16.xpose.msra.mxu0 0
        %1373 = vmatprep.subr.bf16.mxu0 0
        %1374 = vmatpush1.bf16.xpose.msra.mxu0 0
        %1375 = vmatprep.subr.bf16.mxu0 0
        %1376 = vmatpush1.bf16.xpose.msra.mxu0 0
        %1377 = vmatprep.subr.bf16.mxu0 0
        %1378 = vmatpush1.bf16.xpose.msra.mxu0 0
        %1379 = vmatprep.subr.bf16.mxu0 0
        %1380 = vmatpush1.bf16.xpose.msra.mxu0 0
        %1381 = vmatprep.subr.bf16.mxu0 0
        %1382 = vmatpush1.bf16.xpose.msra.mxu0 0
        %1383 = vmatprep.subr.bf16.mxu0 0
        %1384 = vmatpush1.bf16.xpose.msra.mxu0 0
        %1385 = vmatprep.subr.bf16.mxu0 0
        %1386 = vmatpush1.bf16.xpose.msra.mxu0 0
        %1387 = vmatprep.mubr.bf16.mxu0 0
        %1388 = vmatmul.mubr.bf16.gmra.mrb[0].mxu0 %v1347
        %v1389 = vpop.f32.mrb[0].mxu0
        %v1390 = vadd.f32 0.0, %v1389
        %v1391 = vpop.f32.mrb[0].mxu0
        %v1392 = vpop.f32.mrb[0].mxu0
        %v1393 = vadd.f32 0.0, %v1392
        %v1394 = vpop.f32.mrb[0].mxu0
        %1395 = vmatprep.mubr.bf16.mxu0 0
        %1396 = vmatmul.mubr.bf16.gmra.mrb[0].mxu0 %v1348
        %v1397 = vpop.f32.mrb[0].mxu0
        %v1398 = vadd.f32 0.0, %v1397
        %v1399 = vpop.f32.mrb[0].mxu0
        %v1400 = vpop.f32.mrb[0].mxu0
        %v1401 = vadd.f32 0.0, %v1400
        %v1402 = vpop.f32.mrb[0].mxu0
        %1403 = vmatprep.mubr.bf16.mxu0 0
        %1404 = vmatmul.mubr.bf16.gmra.mrb[0].mxu0 %v1349
        %v1405 = vpop.f32.mrb[0].mxu0
        %v1406 = vadd.f32 0.0, %v1405
        %v1407 = vpop.f32.mrb[0].mxu0
        %v1408 = vpop.f32.mrb[0].mxu0
        %v1409 = vadd.f32 0.0, %v1408
        %v1410 = vpop.f32.mrb[0].mxu0
        %1411 = vmatprep.mubr.bf16.mxu0 0
        %1412 = vmatmul.mubr.bf16.gmra.mrb[0].mxu0 %v1350
        %v1413 = vpop.f32.mrb[0].mxu0
        %v1414 = vadd.f32 0.0, %v1413
        %v1415 = vpop.f32.mrb[0].mxu0
        %v1416 = vpop.f32.mrb[0].mxu0
        %v1417 = vadd.f32 0.0, %v1416
        %v1418 = vpop.f32.mrb[0].mxu0
        %1419 = vmatprep.mubr.bf16.mxu0 0
        %1420 = vmatmul.mubr.bf16.gmra.mrb[0].mxu0 %v1351
        %v1421 = vpop.f32.mrb[0].mxu0
        %v1422 = vadd.f32 0.0, %v1421
        %v1423 = vpop.f32.mrb[0].mxu0
        %v1424 = vpop.f32.mrb[0].mxu0
        %v1425 = vadd.f32 0.0, %v1424
        %v1426 = vpop.f32.mrb[0].mxu0
        %1427 = vmatprep.mubr.bf16.mxu0 0
        %1428 = vmatmul.mubr.bf16.gmra.mrb[0].mxu0 %v1352
        %v1429 = vpop.f32.mrb[0].mxu0
        %v1430 = vadd.f32 0.0, %v1429
        %v1431 = vpop.f32.mrb[0].mxu0
        %v1432 = vpop.f32.mrb[0].mxu0
        %v1433 = vadd.f32 0.0, %v1432
        %v1434 = vpop.f32.mrb[0].mxu0
        %1435 = vmatprep.mubr.bf16.mxu0 0
        %1436 = vmatmul.mubr.bf16.gmra.mrb[0].mxu0 %v1353
        %v1437 = vpop.f32.mrb[0].mxu0
        %v1438 = vadd.f32 0.0, %v1437
        %v1439 = vpop.f32.mrb[0].mxu0
        %v1440 = vpop.f32.mrb[0].mxu0
        %v1441 = vadd.f32 0.0, %v1440
        %v1442 = vpop.f32.mrb[0].mxu0
        %1443 = vmatprep.mubr.bf16.mxu0 0
        %1444 = vmatmul.mubr.bf16.gmra.mrb[0].mxu0 %v1354
        %v1445 = vpop.f32.mrb[0].mxu0
        %v1446 = vadd.f32 0.0, %v1445
        %v1447 = vpop.f32.mrb[0].mxu0
        %v1448 = vpop.f32.mrb[0].mxu0
        %v1449 = vadd.f32 0.0, %v1448
        %v1450 = vpop.f32.mrb[0].mxu0
        %1451 = vdwg.mxu0
        %v1452 = vadd.f32 %v1331, %v1390
        %v1453 = vadd.f32 %v1332, %v1393
        %v1454 = vadd.f32 %v1333, %v1398
        %v1455 = vadd.f32 %v1334, %v1401
        %v1456 = vadd.f32 %v1335, %v1406
        %v1457 = vadd.f32 %v1336, %v1409
        %v1458 = vadd.f32 %v1337, %v1414
        %v1459 = vadd.f32 %v1338, %v1417
        %v1460 = vadd.f32 %v1339, %v1422
        %v1461 = vadd.f32 %v1340, %v1425
        %v1462 = vadd.f32 %v1341, %v1430
        %v1463 = vadd.f32 %v1342, %v1433
        %v1464 = vadd.f32 %v1343, %v1438
        %v1465 = vadd.f32 %v1344, %v1441
        %v1466 = vadd.f32 %v1345, %v1446
        %v1467 = vadd.f32 %v1346, %v1449
        %1468 = vst.msk [vmem:[#allocation5] sm:$0xff] %vm689, %v1452
        %1469 = vst.msk [vmem:[#allocation5 + $0x8] sm:$0xff] %vm689, %v1453
        %1470 = vst.msk [vmem:[#allocation5 + $0x10] sm:$0xff] %vm689, %v1454
        %1471 = vst.msk [vmem:[#allocation5 + $0x18] sm:$0xff] %vm689, %v1455
        %1472 = vst.msk [vmem:[#allocation5 + $0x20] sm:$0xff] %vm689, %v1456
        %1473 = vst.msk [vmem:[#allocation5 + $0x28] sm:$0xff] %vm689, %v1457
        %1474 = vst.msk [vmem:[#allocation5 + $0x30] sm:$0xff] %vm689, %v1458
        %1475 = vst.msk [vmem:[#allocation5 + $0x38] sm:$0xff] %vm689, %v1459
        %1476 = vst.msk [vmem:[#allocation5 + $0x40] sm:$0xff] %vm689, %v1460
        %1477 = vst.msk [vmem:[#allocation5 + $0x48] sm:$0xff] %vm689, %v1461
        %1478 = vst.msk [vmem:[#allocation5 + $0x50] sm:$0xff] %vm689, %v1462
        %1479 = vst.msk [vmem:[#allocation5 + $0x58] sm:$0xff] %vm689, %v1463
        %1480 = vst.msk [vmem:[#allocation5 + $0x60] sm:$0xff] %vm689, %v1464
        %1481 = vst.msk [vmem:[#allocation5 + $0x68] sm:$0xff] %vm689, %v1465
        %1482 = vst.msk [vmem:[#allocation5 + $0x70] sm:$0xff] %vm689, %v1466
        %1483 = vst.msk [vmem:[#allocation5 + $0x78] sm:$0xff] %vm689, %v1467
        %p1484 = scmp.eq.s32.totalorder %s35, 1
        // Predicated region
        $region65: #{tpu_custom_call.1} parent=51 // pred_check
          %p1485 = pneg %p1484
        $region66: #{tpu_custom_call.1} parent=51 // pred_check_branch
          %1487 = sbr.rel (%p1485) target = $region68
        $region67: #{tpu_custom_call.1} parent=51 // pred_region
          %v1488 = vld [vmem:[#allocation4] sm:$0xff]
          %v1489 = vld [vmem:[#allocation4 + $0x8] sm:$0xff]
          %v1490 = vld [vmem:[#allocation4 + $0x10] sm:$0xff]
          %v1491 = vld [vmem:[#allocation4 + $0x18] sm:$0xff]
          %v1492 = vld [vmem:[#allocation4 + $0x20] sm:$0xff]
          %v1493 = vld [vmem:[#allocation4 + $0x28] sm:$0xff]
          %v1494 = vld [vmem:[#allocation4 + $0x30] sm:$0xff]
          %v1495 = vld [vmem:[#allocation4 + $0x38] sm:$0xff]
          %v1496 = vld [vmem:[#allocation4 + $0x40] sm:$0xff]
          %v1497 = vld [vmem:[#allocation4 + $0x48] sm:$0xff]
          %v1498 = vld [vmem:[#allocation4 + $0x50] sm:$0xff]
          %v1499 = vld [vmem:[#allocation4 + $0x58] sm:$0xff]
          %v1500 = vld [vmem:[#allocation4 + $0x60] sm:$0xff]
          %v1501 = vld [vmem:[#allocation4 + $0x68] sm:$0xff]
          %v1502 = vld [vmem:[#allocation4 + $0x70] sm:$0xff]
          %v1503 = vld [vmem:[#allocation4 + $0x78] sm:$0xff]
          %v1504 = vrcp.pop %v1488
          %v1505 = vrcp.pop %v1489
          %v1506 = vrcp.pop %v1490
          %v1507 = vrcp.pop %v1491
          %v1508 = vrcp.pop %v1492
          %v1509 = vrcp.pop %v1493
          %v1510 = vrcp.pop %v1494
          %v1511 = vrcp.pop %v1495
          %v1512 = vrcp.pop %v1496
          %v1513 = vrcp.pop %v1497
          %v1514 = vrcp.pop %v1498
          %v1515 = vrcp.pop %v1499
          %v1516 = vrcp.pop %v1500
          %v1517 = vrcp.pop %v1501
          %v1518 = vrcp.pop %v1502
          %v1519 = vrcp.pop %v1503
          %v1520 = vld [vmem:[#allocation5] sm:$0xff]
          %v1521 = vld [vmem:[#allocation5 + $0x8] sm:$0xff]
          %v1522 = vld [vmem:[#allocation5 + $0x10] sm:$0xff]
          %v1523 = vld [vmem:[#allocation5 + $0x18] sm:$0xff]
          %v1524 = vld [vmem:[#allocation5 + $0x20] sm:$0xff]
          %v1525 = vld [vmem:[#allocation5 + $0x28] sm:$0xff]
          %v1526 = vld [vmem:[#allocation5 + $0x30] sm:$0xff]
          %v1527 = vld [vmem:[#allocation5 + $0x38] sm:$0xff]
          %v1528 = vld [vmem:[#allocation5 + $0x40] sm:$0xff]
          %v1529 = vld [vmem:[#allocation5 + $0x48] sm:$0xff]
          %v1530 = vld [vmem:[#allocation5 + $0x50] sm:$0xff]
          %v1531 = vld [vmem:[#allocation5 + $0x58] sm:$0xff]
          %v1532 = vld [vmem:[#allocation5 + $0x60] sm:$0xff]
          %v1533 = vld [vmem:[#allocation5 + $0x68] sm:$0xff]
          %v1534 = vld [vmem:[#allocation5 + $0x70] sm:$0xff]
          %v1535 = vld [vmem:[#allocation5 + $0x78] sm:$0xff]
          %1537 = vset.pattern.permute.xlu0 0
          %1538 = vperm.xlu0 %1537, %v1504
          %v1539 = vpop.permute.xlu0 %1538
          %1542 = vset.pattern.permute.xlu0 0
          %1543 = vperm.xlu0 %1542, %v1505
          %v1544 = vpop.permute.xlu0 %1543
          %1547 = vset.pattern.permute.xlu0 0
          %1548 = vperm.xlu0 %1547, %v1506
          %v1549 = vpop.permute.xlu0 %1548
          %1552 = vset.pattern.permute.xlu0 0
          %1553 = vperm.xlu0 %1552, %v1507
          %v1554 = vpop.permute.xlu0 %1553
          %1557 = vset.pattern.permute.xlu0 0
          %1558 = vperm.xlu0 %1557, %v1508
          %v1559 = vpop.permute.xlu0 %1558
          %1562 = vset.pattern.permute.xlu0 0
          %1563 = vperm.xlu0 %1562, %v1509
          %v1564 = vpop.permute.xlu0 %1563
          %1567 = vset.pattern.permute.xlu0 0
          %1568 = vperm.xlu0 %1567, %v1510
          %v1569 = vpop.permute.xlu0 %1568
          %1572 = vset.pattern.permute.xlu0 0
          %1573 = vperm.xlu0 %1572, %v1511
          %v1574 = vpop.permute.xlu0 %1573
          %1577 = vset.pattern.permute.xlu0 0
          %1578 = vperm.xlu0 %1577, %v1512
          %v1579 = vpop.permute.xlu0 %1578
          %1582 = vset.pattern.permute.xlu0 0
          %1583 = vperm.xlu0 %1582, %v1513
          %v1584 = vpop.permute.xlu0 %1583
          %1587 = vset.pattern.permute.xlu0 0
          %1588 = vperm.xlu0 %1587, %v1514
          %v1589 = vpop.permute.xlu0 %1588
          %1592 = vset.pattern.permute.xlu0 0
          %1593 = vperm.xlu0 %1592, %v1515
          %v1594 = vpop.permute.xlu0 %1593
          %1597 = vset.pattern.permute.xlu0 0
          %1598 = vperm.xlu0 %1597, %v1516
          %v1599 = vpop.permute.xlu0 %1598
          %1602 = vset.pattern.permute.xlu0 0
          %1603 = vperm.xlu0 %1602, %v1517
          %v1604 = vpop.permute.xlu0 %1603
          %1607 = vset.pattern.permute.xlu0 0
          %1608 = vperm.xlu0 %1607, %v1518
          %v1609 = vpop.permute.xlu0 %1608
          %1612 = vset.pattern.permute.xlu0 0
          %1613 = vperm.xlu0 %1612, %v1519
          %v1614 = vpop.permute.xlu0 %1613
          %v1616 = vmul.f32 %v1520, %v1539
          %v1617 = vmul.f32 %v1521, %v1544
          %v1618 = vmul.f32 %v1522, %v1549
          %v1619 = vmul.f32 %v1523, %v1554
          %v1620 = vmul.f32 %v1524, %v1559
          %v1621 = vmul.f32 %v1525, %v1564
          %v1622 = vmul.f32 %v1526, %v1569
          %v1623 = vmul.f32 %v1527, %v1574
          %v1624 = vmul.f32 %v1528, %v1579
          %v1625 = vmul.f32 %v1529, %v1584
          %v1626 = vmul.f32 %v1530, %v1589
          %v1627 = vmul.f32 %v1531, %v1594
          %v1628 = vmul.f32 %v1532, %v1599
          %v1629 = vmul.f32 %v1533, %v1604
          %v1630 = vmul.f32 %v1534, %v1609
          %v1631 = vmul.f32 %v1535, %v1614
          %1632 = vxpose.xlu0.b32.start [1/16] %v1616, 128
          %1633 = vxpose.xlu0.b32.cont [2/16] %v1617, 128
          %1634 = vxpose.xlu0.b32.cont [3/16] %v1618, 128
          %1635 = vxpose.xlu0.b32.cont [4/16] %v1619, 128
          %1636 = vxpose.xlu0.b32.cont [5/16] %v1620, 128
          %1637 = vxpose.xlu0.b32.cont [6/16] %v1621, 128
          %1638 = vxpose.xlu0.b32.cont [7/16] %v1622, 128
          %1639 = vxpose.xlu0.b32.cont [8/16] %v1623, 128
          %1640 = vxpose.xlu0.b32.cont [9/16] %v1624, 128
          %1641 = vxpose.xlu0.b32.cont [10/16] %v1625, 128
          %1642 = vxpose.xlu0.b32.cont [11/16] %v1626, 128
          %1643 = vxpose.xlu0.b32.cont [12/16] %v1627, 128
          %1644 = vxpose.xlu0.b32.cont [13/16] %v1628, 128
          %1645 = vxpose.xlu0.b32.cont [14/16] %v1629, 128
          %1646 = vxpose.xlu0.b32.cont [15/16] %v1630, 128
          %1647 = vxpose.xlu0.b32.end [16/16] %v1631, 128
          %v1648 = vpop.trf.xlu0
          %v1649 = vpop.trf.xlu0
          %v1650 = vpop.trf.xlu0
          %v1651 = vpop.trf.xlu0
          %v1652 = vpop.trf.xlu0
          %v1653 = vpop.trf.xlu0
          %v1654 = vpop.trf.xlu0
          %v1655 = vpop.trf.xlu0
          %v1656 = vpop.trf.xlu0
          %v1657 = vpop.trf.xlu0
          %v1658 = vpop.trf.xlu0
          %v1659 = vpop.trf.xlu0
          %v1660 = vpop.trf.xlu0
          %v1661 = vpop.trf.xlu0
          %v1662 = vpop.trf.xlu0
          %v1663 = vpop.trf.xlu0
          %v1664 = vld [vmem:[%s7] sm:$0xff]
          %v1665 = vld [vmem:[%s7 + $0x8] sm:$0xff]
          %v1666 = vld [vmem:[%s7 + $0x10] sm:$0xff]
          %v1667 = vld [vmem:[%s7 + $0x18] sm:$0xff]
          %1669 = vset.pattern.permute.xlu0 0
          %1670 = vperm.xlu0 %1669, %v1664
          %v1671 = vpop.permute.xlu0 %1670
          %1674 = vset.pattern.permute.xlu0 0
          %1675 = vperm.xlu0 %1674, %v1665
          %v1676 = vpop.permute.xlu0 %1675
          %1679 = vset.pattern.permute.xlu0 0
          %1680 = vperm.xlu0 %1679, %v1666
          %v1681 = vpop.permute.xlu0 %1680
          %1684 = vset.pattern.permute.xlu0 0
          %1685 = vperm.xlu0 %1684, %v1667
          %v1686 = vpop.permute.xlu0 %1685
          %v1688 = vadd.f32 %v1648, %v1671
          %v1689 = vadd.f32 %v1649, %v1676
          %v1690 = vadd.f32 %v1650, %v1681
          %v1691 = vadd.f32 %v1651, %v1686
          %v1692 = vld [vmem:[%s372] sm:$0xff]
          %v1693 = vld [vmem:[%s372 + $0x8] sm:$0xff]
          %v1694 = vld [vmem:[%s372 + $0x10] sm:$0xff]
          %v1695 = vld [vmem:[%s372 + $0x18] sm:$0xff]
          %v1696 = vadd.f32 %v1688, %v1692
          %v1697 = vadd.f32 %v1689, %v1693
          %v1698 = vadd.f32 %v1690, %v1694
          %v1699 = vadd.f32 %v1691, %v1695
          %1700 = vst [vmem:[%s432] sm:$0xff] %v1696
          %1701 = vst [vmem:[%s432 + $0x8] sm:$0xff] %v1697
          %1702 = vst [vmem:[%s432 + $0x10] sm:$0xff] %v1698
          %1703 = vst [vmem:[%s432 + $0x18] sm:$0xff] %v1699
        $region68: #{tpu_custom_call.1} parent=51 // pred_fallthru
          _
        %s1704 = sand.u32 %s253, 1
        %s1705 = scalar_lea.sflag [#allocation8], %s1704
        %s1706 = sand.u32 %s253, 1
        %s1707 = smul.addr %s1706, 32
        %s1708 = scalar_lea.vmem [#allocation11], %s1707
        // Predicated region
        $region69: #{tpu_custom_call.1} parent=51 // pred_check
          %p1709 = pneg %p263
        $region70: #{tpu_custom_call.1} parent=51 // pred_check_branch
          %1711 = sbr.rel (%p1709) target = $region72
        $region71: #{tpu_custom_call.1} parent=51 // pred_region
          %s1713 = ssub.s32 512, 512
          %1714 = vsyncadd %s1705, %s1713
          %s1715 = smul.addr %s33, 8
          %s1716 = sadd.s32 %s34, %s1715
          %s1717 = smul.addr %s1716, 128
          %s1718 = scalar_lea.hbm %s8, %s1717
          %s1719 = sshll.u32 %s1708, 4
          %s1720 = int_to_ptr.vmem [resolvable:$true] %s1719
          %1725 = dma.vmem_to_hbm [thread:$0]  %s1720, 512, %s1718, %s1705, 128, 256, 8
        $region72: #{tpu_custom_call.1} parent=51 // pred_fallthru
          _
      $region52: #{tpu_custom_call.1} parent=5 // pred_fallthru
        _
      %p1726 = scmp.le.s32.totalorder 2, %s23
      // Predicated region
      $region73: #{tpu_custom_call.1} parent=5 // pred_check
        %p1727 = pneg %p1726
      $region74: #{tpu_custom_call.1} parent=5 // pred_check_branch
        %1729 = sbr.rel (%p1727) target = $region76
      $region75: #{tpu_custom_call.1} parent=5 // pred_region
        %s1730 = ssub.s32 %s23, 2
        // Predicated region
        $region77: #{tpu_custom_call.1} parent=75 // pred_check
          %p1731 = pneg %p269
        $region78: #{tpu_custom_call.1} parent=75 // pred_check_branch
          %1733 = sbr.rel (%p1731) target = $region80
        $region79: #{tpu_custom_call.1} parent=75 // pred_region
          %s1734 = sand.u32 %s254, 1
          %s1735 = scalar_lea.sflag [#allocation8], %s1734
          %s1736 = sand.u32 %s254, 1
          %s1737 = smul.addr %s1736, 32
          %s1738 = scalar_lea.vmem [#allocation11], %s1737
          %1739 = dma.done %s1735, 512
        $region80: #{tpu_custom_call.1} parent=75 // pred_fallthru
          _
      $region76: #{tpu_custom_call.1} parent=5 // pred_fallthru
        _
    $region6: #{tpu_custom_call.1} parent=1 // loop_footer
      %s27 = sadd.s32 1, %s23
    $region7: #{tpu_custom_call.1} parent=1 // loop_footer_branch
      %22 = sbr.rel target = $region3
    $region8: #{tpu_custom_call.1} parent=1 // loop_exit
      _
    %1740 = vsyncpa [#allocation7], 1
    %s1741 = scalar_lea.sflag [#allocation7], 1
    %1742 = vsyncpa %s1741, 1
    %1743 = vsyncpa [#allocation10], 1
    %s1744 = scalar_lea.sflag [#allocation10], 1
    %1745 = vsyncpa %s1744, 1
    %1746 = vsyncpa [#allocation8], 1
    %s1747 = scalar_lea.sflag [#allocation8], 1
    %1748 = vsyncpa %s1747, 1

</llo_original>
